<compile_context>
chip_gen: v7x
topology: tpu7x:2x2x1
jax: 0.10.0
libtpu: 0.0.40
codegen_flags: <defaults>
</compile_context>

<pallas_src>
import functools

import jax
import jax.numpy as jnp
from jax import lax
from jax.experimental import pallas as pl
from jax.experimental.pallas import tpu as pltpu


def _decoder_kernel(T, H, L, V,
                    emb_ref, state0_ref, enc_ref,                 # data inputs
                    w_emb_ref, w_hid_ref, wca_ref, wo_ref, bias_ref,
                    h_ref, c_ref, attn_ref, logp_ref,             # outputs
                    emb_proj_ref, relu_ref):                      # VMEM scratch
    f32 = jnp.float32
    wdt = w_emb_ref.dtype                    # weight dtype (bf16 by default)

    # ---- one-time pre-loop work (hoisted out of the serial recurrence) --------
    # emb_all (T,H) @ [W_attn_e | W_comb_e] -> (T, L+H), batched over all steps.
    # TODO(synk): dropout(p=0.1) on the embedding is identity in eval mode.
    emb_proj_ref[...] = (
        jnp.dot(emb_ref[...], w_emb_ref[...], preferred_element_type=f32)
        + bias_ref[0:1, :L + H])

    # Fold enc @ W_comb_a once, so the per-step attention path is a single
    # (1,L)@(L,H) push instead of two serially dependent matmuls.
    enc_wca = jnp.dot(enc_ref[...], wca_ref[...],
                      preferred_element_type=f32).astype(wdt)      # (L, H)

    w_hid = w_hid_ref[...]                       # (H, L+3H), hoisted VMEM load
    b_hid = bias_ref[1:2, :L + 3 * H]            # (1, L+3H)

    # ---- serial SRU recurrence -------------------------------------------------
    def step(t, carry):
        h, c = carry                             # (1,H) f32 each
        ep = emb_proj_ref[pl.ds(t, 1), :]        # (1, L+H) precomputed row

        # NOTE: h is cast to the weight dtype for the MXU; pass
        # weight_dtype=jnp.float32 to prepare_params for very long decodes.
        hid_proj = (jnp.dot(h.astype(wdt), w_hid, preferred_element_type=f32)
                    + b_hid)                     # (1, L+3H)

        # attn_weights = softmax(attn(cat(emb, hid)))  -- exact reciprocal.
        attn_logits = ep[:, :L] + hid_proj[:, :L]
        m = jnp.max(attn_logits, axis=1, keepdims=True)
        e = jnp.exp(attn_logits - m)
        attn_w = e / jnp.sum(e, axis=1, keepdims=True)             # (1, L)
        attn_ref[pl.ds(t, 1), :] = attn_w.astype(attn_ref.dtype)

        # output = relu(attn_combine(cat(emb, attn_applied)))
        comb = ep[:, L:] + jnp.dot(attn_w.astype(wdt), enc_wca,
                                   preferred_element_type=f32)     # (1, H)
        relu_ref[pl.ds(t, 1), :] = jnp.maximum(comb, 0.0)

        # SRU single-step cell on (hidden, cell).
        x_t = hid_proj[:, L:L + H]
        f_g = jax.nn.sigmoid(hid_proj[:, L + H:L + 2 * H])
        r_g = jax.nn.sigmoid(hid_proj[:, L + 2 * H:L + 3 * H])
        c_new = f_g * c + (1.0 - f_g) * x_t
        h_new = r_g * jnp.tanh(c_new) + (1.0 - r_g) * h
        return (h_new, c_new)

    h0 = state0_ref[0:1, :]
    c0 = state0_ref[1:2, :]
    h_fin, c_fin = lax.fori_loop(0, T, step, (h0, c0), unroll=True)
    h_ref[...] = h_fin
    c_ref[...] = c_fin

    # ---- deferred vocab projection: one batched (T,H)@(H,V) + log_softmax -----
    logits = (jnp.dot(relu_ref[...].astype(wdt), wo_ref[...],
                      preferred_element_type=f32)
              + bias_ref[2:3, :V])                                 # (T, V)
    mo = jnp.max(logits, axis=1, keepdims=True)
    lse = mo + jnp.log(jnp.sum(jnp.exp(logits - mo), axis=1, keepdims=True))
    logp_ref[...] = (logits - lse).astype(logp_ref.dtype)


def init_params(key, hidden_size, output_size, max_length):
    """Deterministic parameter init in PyTorch (out_features, in_features) convention."""
    H, V, L = hidden_size, output_size, max_length
    ks = jax.random.split(key, 12)
    s = 0.1
    return {
        "embedding": jax.random.normal(ks[0], (V, H), jnp.float32) * s,
        "attn_w":    jax.random.normal(ks[1], (L, 2 * H), jnp.float32) * s,
        "attn_b":    jax.random.normal(ks[2], (L,), jnp.float32) * s,
        "comb_w":    jax.random.normal(ks[3], (H, 2 * H), jnp.float32) * s,
        "comb_b":    jax.random.normal(ks[4], (H,), jnp.float32) * s,
        "sru_w":     jax.random.normal(ks[5], (H, H), jnp.float32) * s,
        "sru_wf":    jax.random.normal(ks[6], (H, H), jnp.float32) * s,
        "sru_bf":    jax.random.normal(ks[7], (H,), jnp.float32) * s,
        "sru_wr":    jax.random.normal(ks[8], (H, H), jnp.float32) * s,
        "sru_br":    jax.random.normal(ks[9], (H,), jnp.float32) * s,
        "out_w":     jax.random.normal(ks[10], (V, H), jnp.float32) * s,
        "out_b":     jax.random.normal(ks[11], (V,), jnp.float32) * s,
    }


def prepare_params(params, weight_dtype=jnp.bfloat16):
    """One-time preprocessing: transpose / split / fuse / cast weights.

    Done once outside the per-call jit so no per-call HBM copies are paid.
    Weights and the embedding table go to `weight_dtype` (bf16 default; f32
    accumulation happens in-kernel); biases stay f32.  The bias slab lane
    width is padded to a multiple of 128 for unmasked loads.
    """
    H = params["sru_w"].shape[0]
    L = params["attn_w"].shape[0]
    V = params["out_w"].shape[0]

    wae = params["attn_w"][:, :H].T          # (H, L)
    wah = params["attn_w"][:, H:].T          # (H, L)
    wce = params["comb_w"][:, :H].T          # (H, H)
    wca = params["comb_w"][:, H:].T          # (H, H)
    wsx = params["sru_w"].T                  # (H, H)
    wsf = params["sru_wf"].T
    wsr = params["sru_wr"].T
    wo = params["out_w"].T                   # (H, V)

    w_emb = jnp.concatenate([wae, wce], axis=1).astype(weight_dtype)            # (H, L+H)
    w_hid = jnp.concatenate([wah, wsx, wsf, wsr], axis=1).astype(weight_dtype)  # (H, L+3H)

    bw = max(L + H, L + 3 * H, V)
    bw = ((bw + 127) // 128) * 128           # lane-align the bias slab

    def pad_row(v):
        return jnp.pad(v, (0, bw - v.shape[0]))[None, :]

    b_emb = pad_row(jnp.concatenate([jnp.zeros((L,), jnp.float32), params["comb_b"]]))
    b_hid = pad_row(jnp.concatenate([params["attn_b"], jnp.zeros((H,), jnp.float32),
                                     params["sru_bf"], params["sru_br"]]))
    b_out = pad_row(params["out_b"])
    biases = jnp.concatenate([b_emb, b_hid, b_out], axis=0).astype(jnp.float32)  # (3, bw)

    return {
        "emb_table": params["embedding"].astype(weight_dtype),   # (V, H)
        "w_emb": w_emb,
        "w_hid": w_hid,
        "wca": wca.astype(weight_dtype),
        "wo": wo.astype(weight_dtype),
        "biases": biases,
    }


@jax.jit
def attn_decoder_decode(toks, hidden, cell, encoder_outputs, prep):
    """Runs T teacher-forced decoder steps inside ONE pallas_call invocation.

    toks: int32 (T,); hidden/cell: (1,1,H); encoder_outputs: (L,H).
    T = 1 is exactly the reference module's forward().
    Returns (hidden, cell, attn_weights, log_probs): final states (1,1,H),
    attn_weights (T,L), log_probs (T,V).
    """
    H = hidden.shape[-1]
    L = encoder_outputs.shape[0]
    V = prep["wo"].shape[1]
    T = toks.shape[0]
    wdt = prep["w_emb"].dtype

    # Embedding gather hoisted out of the kernel (teacher forcing: all toks known).
    toks = jnp.clip(toks.astype(jnp.int32), 0, V - 1)      # guard OOB indices
    emb_all = jnp.take(prep["emb_table"], toks, axis=0)    # (T, H) in weight dtype

    state0 = jnp.concatenate(
        [hidden.reshape(1, H), cell.reshape(1, H)], axis=0).astype(jnp.float32)
    enc = encoder_outputs.astype(wdt)

    kernel = functools.partial(_decoder_kernel, T, H, L, V)

    grid_spec = pltpu.PrefetchScalarGridSpec(
        num_scalar_prefetch=0,
        grid=(1,),                                         # single invocation;
        in_specs=[                                         # recurrence runs in-kernel
            pl.BlockSpec((T, H), lambda i: (0, 0)),        # embedded rows
            pl.BlockSpec((2, H), lambda i: (0, 0)),        # init (hid, cell)
            pl.BlockSpec((L, H), lambda i: (0, 0)),        # encoder outputs
            pl.BlockSpec((H, L + H), lambda i: (0, 0)),    # fused emb weights
            pl.BlockSpec((H, L + 3 * H), lambda i: (0, 0)),  # fused hid weights
            pl.BlockSpec((H, H), lambda i: (0, 0)),        # wca
            pl.BlockSpec((H, V), lambda i: (0, 0)),        # wo
            pl.BlockSpec(prep["biases"].shape, lambda i: (0, 0)),  # bias slab
        ],
        out_specs=(
            pl.BlockSpec((1, H), lambda i: (0, 0)),        # final hidden
            pl.BlockSpec((1, H), lambda i: (0, 0)),        # final cell
            pl.BlockSpec((T, L), lambda i: (0, 0)),        # all attn weights
            pl.BlockSpec((T, V), lambda i: (0, 0)),        # all log-probs
        ),
        scratch_shapes=[
            pltpu.VMEM((T, L + H), jnp.float32),           # precomputed emb projections
            pltpu.VMEM((T, H), jnp.float32),               # relu(comb) rows
        ],
    )

    h_new, c_new, attn_w, logp = pl.pallas_call(
        kernel,
        grid_spec=grid_spec,
        out_shape=(
            jax.ShapeDtypeStruct((1, H), jnp.float32),
            jax.ShapeDtypeStruct((1, H), jnp.float32),
            jax.ShapeDtypeStruct((T, L), jnp.float32),
            jax.ShapeDtypeStruct((T, V), jnp.float32),
        ),
        compiler_params=pltpu.CompilerParams(
            dimension_semantics=("arbitrary",)),
    )(emb_all, state0, enc,
      prep["w_emb"], prep["w_hid"], prep["wca"], prep["wo"], prep["biases"])

    return h_new.reshape(1, 1, H), c_new.reshape(1, 1, H), attn_w, logp


def reference_decode(toks, hidden, cell, encoder_outputs, params):
    """Pure-JAX f32 reference mirroring the PyTorch module, T teacher-forced steps."""
    H = hidden.shape[-1]
    h = hidden.reshape(1, H).astype(jnp.float32)
    c = cell.reshape(1, H).astype(jnp.float32)
    enc = encoder_outputs.astype(jnp.float32)
    attn_list, logp_list = [], []
    for t in range(toks.shape[0]):
        emb = params["embedding"][toks[t]][None, :]
        attn_logits = (jnp.concatenate([emb, h], axis=1) @ params["attn_w"].T
                       + params["attn_b"][None, :])
        attn_w = jax.nn.softmax(attn_logits, axis=1)
        attn_applied = attn_w @ enc
        comb = (jnp.concatenate([emb, attn_applied], axis=1) @ params["comb_w"].T
                + params["comb_b"][None, :])
        output = jax.nn.relu(comb)
        x_t = h @ params["sru_w"].T
        f = jax.nn.sigmoid(h @ params["sru_wf"].T + params["sru_bf"][None, :])
        r = jax.nn.sigmoid(h @ params["sru_wr"].T + params["sru_br"][None, :])
        c_new = f * c + (1.0 - f) * x_t
        h_new = r * jnp.tanh(c_new) + (1.0 - r) * h
        h, c = h_new, c_new
        logp = jax.nn.log_softmax(output @ params["out_w"].T + params["out_b"][None, :],
                                  axis=1)
        attn_list.append(attn_w)
        logp_list.append(logp)
    return (h.reshape(1, 1, H), c.reshape(1, 1, H),
            jnp.concatenate(attn_list, axis=0), jnp.concatenate(logp_list, axis=0))


if __name__ == "__main__":
    hidden_size, output_size, max_length = 32, 20, 10
    T = 4  # number of decode steps carried inside the kernel (T=1 == module.forward)

    key = jax.random.PRNGKey(0)
    k_params, k_enc, k_hid, k_cell, k_tok = jax.random.split(key, 5)

    params = init_params(k_params, hidden_size, output_size, max_length)
    prep = prepare_params(params)   # one-time: fuse / transpose / cast weights

    toks = jax.random.randint(k_tok, (T,), 0, output_size, dtype=jnp.int32)
    hidden = jax.random.normal(k_hid, (1, 1, hidden_size), jnp.float32) * 0.1
    cell = jax.random.normal(k_cell, (1, 1, hidden_size), jnp.float32) * 0.1
    encoder_outputs = jax.random.normal(
        k_enc, (max_length, hidden_size), jnp.float32) * 0.1

    h_new, c_new, attn_w, logp = attn_decoder_decode(
        toks, hidden, cell, encoder_outputs, prep)
    jax.block_until_ready((h_new, c_new, attn_w, logp))

    # Shape / sanity checks (module returns (hidden, cell, attn_weights)).
    assert h_new.shape == (1, 1, hidden_size)
    assert c_new.shape == (1, 1, hidden_size)
    assert attn_w.shape == (T, max_length)
    assert logp.shape == (T, output_size)
    assert bool(jnp.all(jnp.isfinite(h_new))) and bool(jnp.all(jnp.isfinite(logp)))
    # Softmax rows sum to ~1 (exact reciprocal => tight tolerance).
    assert bool(jnp.all(jnp.abs(jnp.sum(attn_w, axis=1) - 1.0) < 1e-3))

    # Compare against the pure-JAX f32 reference (bf16 weights in the kernel).
    h_r, c_r, attn_r, logp_r = reference_decode(
        toks, hidden, cell, encoder_outputs, params)
    for got, ref in ((h_new, h_r), (c_new, c_r), (attn_w, attn_r), (logp, logp_r)):
        assert bool(jnp.all(jnp.abs(got - ref) < 2e-2)), "mismatch vs. pure-JAX reference"

    print("KERNEL_OK")
</pallas_src>

<mosaic_0001>
module attributes {stable_mosaic.version = 11 : i64} {
  func.func @_decoder_kernel(%arg0: i32, %arg1: memref<4x32xbf16, #tpu.memory_space<vmem>>, %arg2: memref<2x32xf32, #tpu.memory_space<vmem>>, %arg3: memref<10x32xbf16, #tpu.memory_space<vmem>>, %arg4: memref<32x42xbf16, #tpu.memory_space<vmem>>, %arg5: memref<32x106xbf16, #tpu.memory_space<vmem>>, %arg6: memref<32x32xbf16, #tpu.memory_space<vmem>>, %arg7: memref<32x20xbf16, #tpu.memory_space<vmem>>, %arg8: memref<3x128xf32, #tpu.memory_space<vmem>>, %arg9: memref<1x32xf32, #tpu.memory_space<vmem>>, %arg10: memref<1x32xf32, #tpu.memory_space<vmem>>, %arg11: memref<4x10xf32, #tpu.memory_space<vmem>>, %arg12: memref<4x20xf32, #tpu.memory_space<vmem>>, %arg13: memref<4x42xf32, #tpu.memory_space<vmem>>, %arg14: memref<4x32xf32, #tpu.memory_space<vmem>>) attributes {dimension_semantics = [#tpu.dimension_semantics<arbitrary>], iteration_bounds = array<i64: 1>, scalar_prefetch = 0 : i64, scratch_operands = 2 : i64, tpu.core_type = #tpu.core_type<tc>, window_params = [{pipeline_mode = #tpu.pipeline_mode<synchronous>, transform_indices = @transform_0, window_bounds = array<i64: 4, 32>}, {pipeline_mode = #tpu.pipeline_mode<synchronous>, transform_indices = @transform_1, window_bounds = array<i64: 2, 32>}, {pipeline_mode = #tpu.pipeline_mode<synchronous>, transform_indices = @transform_2, window_bounds = array<i64: 10, 32>}, {pipeline_mode = #tpu.pipeline_mode<synchronous>, transform_indices = @transform_3, window_bounds = array<i64: 32, 42>}, {pipeline_mode = #tpu.pipeline_mode<synchronous>, transform_indices = @transform_4, window_bounds = array<i64: 32, 106>}, {pipeline_mode = #tpu.pipeline_mode<synchronous>, transform_indices = @transform_5, window_bounds = array<i64: 32, 32>}, {pipeline_mode = #tpu.pipeline_mode<synchronous>, transform_indices = @transform_6, window_bounds = array<i64: 32, 20>}, {pipeline_mode = #tpu.pipeline_mode<synchronous>, transform_indices = @transform_7, window_bounds = array<i64: 3, 128>}, {pipeline_mode = #tpu.pipeline_mode<synchronous>, transform_indices = @transform_8, window_bounds = array<i64: 1, 32>}, {pipeline_mode = #tpu.pipeline_mode<synchronous>, transform_indices = @transform_9, window_bounds = array<i64: 1, 32>}, {pipeline_mode = #tpu.pipeline_mode<synchronous>, transform_indices = @transform_10, window_bounds = array<i64: 4, 10>}, {pipeline_mode = #tpu.pipeline_mode<synchronous>, transform_indices = @transform_11, window_bounds = array<i64: 4, 20>}]} {
    %c0 = arith.constant 0 : index
    %c0_0 = arith.constant 0 : index
    %0 = vector.load %arg1[%c0, %c0_0] : memref<4x32xbf16, #tpu.memory_space<vmem>>, vector<4x32xbf16>
    %c0_1 = arith.constant 0 : index
    %c0_2 = arith.constant 0 : index
    %1 = vector.load %arg4[%c0_1, %c0_2] : memref<32x42xbf16, #tpu.memory_space<vmem>>, vector<32x42xbf16>
    %cst = arith.constant dense<0.000000e+00> : vector<4x42xf32>
    %2 = tpu.matmul %0, %1, %cst {dimension_numbers = #tpu.dot_dimension_numbers<[1], [0], [0], [1], [0, 0, 1, 1], [], []>} : vector<4x32xbf16>, vector<32x42xbf16>, vector<4x42xf32> -> vector<4x42xf32>
    %c0_3 = arith.constant 0 : index
    %c0_4 = arith.constant 0 : index
    %3 = vector.load %arg8[%c0_3, %c0_4] : memref<3x128xf32, #tpu.memory_space<vmem>>, vector<1x42xf32>
    %4 = vector.broadcast %3 : vector<1x42xf32> to vector<4x42xf32>
    %5 = arith.addf %2, %4 : vector<4x42xf32>
    %c0_5 = arith.constant 0 : index
    %c0_6 = arith.constant 0 : index
    %6 = vector.load %arg13[%c0_5, %c0_6] : memref<4x42xf32, #tpu.memory_space<vmem>>, vector<4x42xf32>
    tpu.vector_store %arg13[%c0_5, %c0_6], %5 {strides = array<i32>} : memref<4x42xf32, #tpu.memory_space<vmem>>, vector<4x42xf32>,
    %c0_7 = arith.constant 0 : index
    %c0_8 = arith.constant 0 : index
    %7 = vector.load %arg3[%c0_7, %c0_8] : memref<10x32xbf16, #tpu.memory_space<vmem>>, vector<10x32xbf16>
    %c0_9 = arith.constant 0 : index
    %c0_10 = arith.constant 0 : index
    %8 = vector.load %arg6[%c0_9, %c0_10] : memref<32x32xbf16, #tpu.memory_space<vmem>>, vector<32x32xbf16>
    %cst_11 = arith.constant dense<0.000000e+00> : vector<10x32xf32>
    %9 = tpu.matmul %7, %8, %cst_11 {dimension_numbers = #tpu.dot_dimension_numbers<[1], [0], [0], [1], [0, 0, 1, 1], [], []>} : vector<10x32xbf16>, vector<32x32xbf16>, vector<10x32xf32> -> vector<10x32xf32>
    %10 = arith.truncf %9 : vector<10x32xf32> to vector<10x32xbf16>
    %c0_12 = arith.constant 0 : index
    %c0_13 = arith.constant 0 : index
    %11 = vector.load %arg5[%c0_12, %c0_13] : memref<32x106xbf16, #tpu.memory_space<vmem>>, vector<32x106xbf16>
    %c1 = arith.constant 1 : index
    %c0_14 = arith.constant 0 : index
    %12 = vector.load %arg8[%c1, %c0_14] : memref<3x128xf32, #tpu.memory_space<vmem>>, vector<1x106xf32>
    %c0_15 = arith.constant 0 : index
    %c0_16 = arith.constant 0 : index
    %13 = vector.load %arg2[%c0_15, %c0_16] : memref<2x32xf32, #tpu.memory_space<vmem>>, vector<1x32xf32>
    %c1_17 = arith.constant 1 : index
    %c0_18 = arith.constant 0 : index
    %14 = vector.load %arg2[%c1_17, %c0_18] : memref<2x32xf32, #tpu.memory_space<vmem>>, vector<1x32xf32>
    %c0_i32 = arith.constant 0 : i32
    %15 = arith.index_cast %c0_i32 : i32 to index
    %c0_19 = arith.constant 0 : index
    %16 = vector.load %arg13[%15, %c0_19] : memref<4x42xf32, #tpu.memory_space<vmem>>, vector<1x42xf32>
    %17 = arith.truncf %13 : vector<1x32xf32> to vector<1x32xbf16>
    %cst_20 = arith.constant dense<0.000000e+00> : vector<1x106xf32>
    %18 = tpu.matmul %17, %11, %cst_20 {dimension_numbers = #tpu.dot_dimension_numbers<[1], [0], [0], [1], [0, 0, 1, 1], [], []>} : vector<1x32xbf16>, vector<32x106xbf16>, vector<1x106xf32> -> vector<1x106xf32>
    %19 = arith.addf %18, %12 : vector<1x106xf32>
    %20 = vector.extract_strided_slice %16 {offsets = [0, 0], sizes = [1, 10], strides = [1, 1]} : vector<1x42xf32> to vector<1x10xf32>
    %21 = vector.extract_strided_slice %19 {offsets = [0, 0], sizes = [1, 10], strides = [1, 1]} : vector<1x106xf32> to vector<1x10xf32>
    %22 = arith.addf %20, %21 : vector<1x10xf32>
    %cst_21 = arith.constant dense<0xFF800000> : vector<1xf32>
    %23 = vector.multi_reduction <maximumf>, %22, %cst_21 [1] : vector<1x10xf32> to vector<1xf32>
    %24 = vector.shape_cast %23 : vector<1xf32> to vector<1x1xf32>
    %25 = vector.broadcast %24 : vector<1x1xf32> to vector<1x10xf32>
    %26 = arith.subf %22, %25 : vector<1x10xf32>
    %27 = math.exp %26 : vector<1x10xf32>
    %cst_22 = arith.constant dense<0.000000e+00> : vector<1xf32>
    %28 = vector.multi_reduction <add>, %27, %cst_22 [1] : vector<1x10xf32> to vector<1xf32>
    %29 = vector.shape_cast %28 : vector<1xf32> to vector<1x1xf32>
    %30 = vector.broadcast %29 : vector<1x1xf32> to vector<1x10xf32>
    %31 = arith.divf %27, %30 : vector<1x10xf32>
    %32 = arith.index_cast %c0_i32 : i32 to index
    %c0_23 = arith.constant 0 : index
    %33 = vector.load %arg11[%32, %c0_23] : memref<4x10xf32, #tpu.memory_space<vmem>>, vector<1x10xf32>
    tpu.vector_store %arg11[%32, %c0_23], %31 {strides = array<i32>} : memref<4x10xf32, #tpu.memory_space<vmem>>, vector<1x10xf32>,
    %34 = vector.extract_strided_slice %16 {offsets = [0, 10], sizes = [1, 32], strides = [1, 1]} : vector<1x42xf32> to vector<1x32xf32>
    %35 = arith.truncf %31 : vector<1x10xf32> to vector<1x10xbf16>
    %cst_24 = arith.constant dense<0.000000e+00> : vector<1x32xf32>
    %36 = tpu.matmul %35, %10, %cst_24 {dimension_numbers = #tpu.dot_dimension_numbers<[1], [0], [0], [1], [0, 0, 1, 1], [], []>} : vector<1x10xbf16>, vector<10x32xbf16>, vector<1x32xf32> -> vector<1x32xf32>
    %37 = arith.addf %34, %36 : vector<1x32xf32>
    %cst_25 = arith.constant 0.000000e+00 : f32
    %38 = vector.broadcast %cst_25 : f32 to vector<1x32xf32>
    %39 = arith.maximumf %37, %38 : vector<1x32xf32>
    %40 = arith.index_cast %c0_i32 : i32 to index
    %c0_26 = arith.constant 0 : index
    %41 = vector.load %arg14[%40, %c0_26] : memref<4x32xf32, #tpu.memory_space<vmem>>, vector<1x32xf32>
    tpu.vector_store %arg14[%40, %c0_26], %39 {strides = array<i32>} : memref<4x32xf32, #tpu.memory_space<vmem>>, vector<1x32xf32>,
    %42 = vector.extract_strided_slice %19 {offsets = [0, 10], sizes = [1, 32], strides = [1, 1]} : vector<1x106xf32> to vector<1x32xf32>
    %43 = vector.extract_strided_slice %19 {offsets = [0, 42], sizes = [1, 32], strides = [1, 1]} : vector<1x106xf32> to vector<1x32xf32>
    %44 = arith.negf %43 : vector<1x32xf32>
    %45 = math.exp %44 : vector<1x32xf32>
    %cst_27 = arith.constant 1.000000e+00 : f32
    %46 = vector.broadcast %cst_27 : f32 to vector<1x32xf32>
    %47 = arith.addf %46, %45 : vector<1x32xf32>
    %48 = arith.divf %46, %47 : vector<1x32xf32>
    %49 = vector.extract_strided_slice %19 {offsets = [0, 74], sizes = [1, 32], strides = [1, 1]} : vector<1x106xf32> to vector<1x32xf32>
    %50 = arith.negf %49 : vector<1x32xf32>
    %51 = math.exp %50 : vector<1x32xf32>
    %cst_28 = arith.constant 1.000000e+00 : f32
    %52 = vector.broadcast %cst_28 : f32 to vector<1x32xf32>
    %53 = arith.addf %52, %51 : vector<1x32xf32>
    %54 = arith.divf %52, %53 : vector<1x32xf32>
    %55 = arith.mulf %48, %14 : vector<1x32xf32>
    %cst_29 = arith.constant 1.000000e+00 : f32
    %56 = vector.broadcast %cst_29 : f32 to vector<1x32xf32>
    %57 = arith.subf %56, %48 : vector<1x32xf32>
    %58 = arith.mulf %57, %42 : vector<1x32xf32>
    %59 = arith.addf %55, %58 : vector<1x32xf32>
    %60 = math.tanh %59 : vector<1x32xf32>
    %61 = arith.mulf %54, %60 : vector<1x32xf32>
    %cst_30 = arith.constant 1.000000e+00 : f32
    %62 = vector.broadcast %cst_30 : f32 to vector<1x32xf32>
    %63 = arith.subf %62, %54 : vector<1x32xf32>
    %64 = arith.mulf %63, %13 : vector<1x32xf32>
    %65 = arith.addf %61, %64 : vector<1x32xf32>
    %c1_i32 = arith.constant 1 : i32
    %66 = arith.index_cast %c1_i32 : i32 to index
    %c0_31 = arith.constant 0 : index
    %67 = vector.load %arg13[%66, %c0_31] : memref<4x42xf32, #tpu.memory_space<vmem>>, vector<1x42xf32>
    %68 = arith.truncf %65 : vector<1x32xf32> to vector<1x32xbf16>
    %cst_32 = arith.constant dense<0.000000e+00> : vector<1x106xf32>
    %69 = tpu.matmul %68, %11, %cst_32 {dimension_numbers = #tpu.dot_dimension_numbers<[1], [0], [0], [1], [0, 0, 1, 1], [], []>} : vector<1x32xbf16>, vector<32x106xbf16>, vector<1x106xf32> -> vector<1x106xf32>
    %70 = arith.addf %69, %12 : vector<1x106xf32>
    %71 = vector.extract_strided_slice %67 {offsets = [0, 0], sizes = [1, 10], strides = [1, 1]} : vector<1x42xf32> to vector<1x10xf32>
    %72 = vector.extract_strided_slice %70 {offsets = [0, 0], sizes = [1, 10], strides = [1, 1]} : vector<1x106xf32> to vector<1x10xf32>
    %73 = arith.addf %71, %72 : vector<1x10xf32>
    %cst_33 = arith.constant dense<0xFF800000> : vector<1xf32>
    %74 = vector.multi_reduction <maximumf>, %73, %cst_33 [1] : vector<1x10xf32> to vector<1xf32>
    %75 = vector.shape_cast %74 : vector<1xf32> to vector<1x1xf32>
    %76 = vector.broadcast %75 : vector<1x1xf32> to vector<1x10xf32>
    %77 = arith.subf %73, %76 : vector<1x10xf32>
    %78 = math.exp %77 : vector<1x10xf32>
    %cst_34 = arith.constant dense<0.000000e+00> : vector<1xf32>
    %79 = vector.multi_reduction <add>, %78, %cst_34 [1] : vector<1x10xf32> to vector<1xf32>
    %80 = vector.shape_cast %79 : vector<1xf32> to vector<1x1xf32>
    %81 = vector.broadcast %80 : vector<1x1xf32> to vector<1x10xf32>
    %82 = arith.divf %78, %81 : vector<1x10xf32>
    %83 = arith.index_cast %c1_i32 : i32 to index
    %c0_35 = arith.constant 0 : index
    %84 = vector.load %arg11[%83, %c0_35] : memref<4x10xf32, #tpu.memory_space<vmem>>, vector<1x10xf32>
    tpu.vector_store %arg11[%83, %c0_35], %82 {strides = array<i32>} : memref<4x10xf32, #tpu.memory_space<vmem>>, vector<1x10xf32>,
    %85 = vector.extract_strided_slice %67 {offsets = [0, 10], sizes = [1, 32], strides = [1, 1]} : vector<1x42xf32> to vector<1x32xf32>
    %86 = arith.truncf %82 : vector<1x10xf32> to vector<1x10xbf16>
    %cst_36 = arith.constant dense<0.000000e+00> : vector<1x32xf32>
    %87 = tpu.matmul %86, %10, %cst_36 {dimension_numbers = #tpu.dot_dimension_numbers<[1], [0], [0], [1], [0, 0, 1, 1], [], []>} : vector<1x10xbf16>, vector<10x32xbf16>, vector<1x32xf32> -> vector<1x32xf32>
    %88 = arith.addf %85, %87 : vector<1x32xf32>
    %cst_37 = arith.constant 0.000000e+00 : f32
    %89 = vector.broadcast %cst_37 : f32 to vector<1x32xf32>
    %90 = arith.maximumf %88, %89 : vector<1x32xf32>
    %91 = arith.index_cast %c1_i32 : i32 to index
    %c0_38 = arith.constant 0 : index
    %92 = vector.load %arg14[%91, %c0_38] : memref<4x32xf32, #tpu.memory_space<vmem>>, vector<1x32xf32>
    tpu.vector_store %arg14[%91, %c0_38], %90 {strides = array<i32>} : memref<4x32xf32, #tpu.memory_space<vmem>>, vector<1x32xf32>,
    %93 = vector.extract_strided_slice %70 {offsets = [0, 10], sizes = [1, 32], strides = [1, 1]} : vector<1x106xf32> to vector<1x32xf32>
    %94 = vector.extract_strided_slice %70 {offsets = [0, 42], sizes = [1, 32], strides = [1, 1]} : vector<1x106xf32> to vector<1x32xf32>
    %95 = arith.negf %94 : vector<1x32xf32>
    %96 = math.exp %95 : vector<1x32xf32>
    %cst_39 = arith.constant 1.000000e+00 : f32
    %97 = vector.broadcast %cst_39 : f32 to vector<1x32xf32>
    %98 = arith.addf %97, %96 : vector<1x32xf32>
    %99 = arith.divf %97, %98 : vector<1x32xf32>
    %100 = vector.extract_strided_slice %70 {offsets = [0, 74], sizes = [1, 32], strides = [1, 1]} : vector<1x106xf32> to vector<1x32xf32>
    %101 = arith.negf %100 : vector<1x32xf32>
    %102 = math.exp %101 : vector<1x32xf32>
    %cst_40 = arith.constant 1.000000e+00 : f32
    %103 = vector.broadcast %cst_40 : f32 to vector<1x32xf32>
    %104 = arith.addf %103, %102 : vector<1x32xf32>
    %105 = arith.divf %103, %104 : vector<1x32xf32>
    %106 = arith.mulf %99, %59 : vector<1x32xf32>
    %cst_41 = arith.constant 1.000000e+00 : f32
    %107 = vector.broadcast %cst_41 : f32 to vector<1x32xf32>
    %108 = arith.subf %107, %99 : vector<1x32xf32>
    %109 = arith.mulf %108, %93 : vector<1x32xf32>
    %110 = arith.addf %106, %109 : vector<1x32xf32>
    %111 = math.tanh %110 : vector<1x32xf32>
    %112 = arith.mulf %105, %111 : vector<1x32xf32>
    %cst_42 = arith.constant 1.000000e+00 : f32
    %113 = vector.broadcast %cst_42 : f32 to vector<1x32xf32>
    %114 = arith.subf %113, %105 : vector<1x32xf32>
    %115 = arith.mulf %114, %65 : vector<1x32xf32>
    %116 = arith.addf %112, %115 : vector<1x32xf32>
    %c2_i32 = arith.constant 2 : i32
    %117 = arith.index_cast %c2_i32 : i32 to index
    %c0_43 = arith.constant 0 : index
    %118 = vector.load %arg13[%117, %c0_43] : memref<4x42xf32, #tpu.memory_space<vmem>>, vector<1x42xf32>
    %119 = arith.truncf %116 : vector<1x32xf32> to vector<1x32xbf16>
    %cst_44 = arith.constant dense<0.000000e+00> : vector<1x106xf32>
    %120 = tpu.matmul %119, %11, %cst_44 {dimension_numbers = #tpu.dot_dimension_numbers<[1], [0], [0], [1], [0, 0, 1, 1], [], []>} : vector<1x32xbf16>, vector<32x106xbf16>, vector<1x106xf32> -> vector<1x106xf32>
    %121 = arith.addf %120, %12 : vector<1x106xf32>
    %122 = vector.extract_strided_slice %118 {offsets = [0, 0], sizes = [1, 10], strides = [1, 1]} : vector<1x42xf32> to vector<1x10xf32>
    %123 = vector.extract_strided_slice %121 {offsets = [0, 0], sizes = [1, 10], strides = [1, 1]} : vector<1x106xf32> to vector<1x10xf32>
    %124 = arith.addf %122, %123 : vector<1x10xf32>
    %cst_45 = arith.constant dense<0xFF800000> : vector<1xf32>
    %125 = vector.multi_reduction <maximumf>, %124, %cst_45 [1] : vector<1x10xf32> to vector<1xf32>
    %126 = vector.shape_cast %125 : vector<1xf32> to vector<1x1xf32>
    %127 = vector.broadcast %126 : vector<1x1xf32> to vector<1x10xf32>
    %128 = arith.subf %124, %127 : vector<1x10xf32>
    %129 = math.exp %128 : vector<1x10xf32>
    %cst_46 = arith.constant dense<0.000000e+00> : vector<1xf32>
    %130 = vector.multi_reduction <add>, %129, %cst_46 [1] : vector<1x10xf32> to vector<1xf32>
    %131 = vector.shape_cast %130 : vector<1xf32> to vector<1x1xf32>
    %132 = vector.broadcast %131 : vector<1x1xf32> to vector<1x10xf32>
    %133 = arith.divf %129, %132 : vector<1x10xf32>
    %134 = arith.index_cast %c2_i32 : i32 to index
    %c0_47 = arith.constant 0 : index
    %135 = vector.load %arg11[%134, %c0_47] : memref<4x10xf32, #tpu.memory_space<vmem>>, vector<1x10xf32>
    tpu.vector_store %arg11[%134, %c0_47], %133 {strides = array<i32>} : memref<4x10xf32, #tpu.memory_space<vmem>>, vector<1x10xf32>,
    %136 = vector.extract_strided_slice %118 {offsets = [0, 10], sizes = [1, 32], strides = [1, 1]} : vector<1x42xf32> to vector<1x32xf32>
    %137 = arith.truncf %133 : vector<1x10xf32> to vector<1x10xbf16>
    %cst_48 = arith.constant dense<0.000000e+00> : vector<1x32xf32>
    %138 = tpu.matmul %137, %10, %cst_48 {dimension_numbers = #tpu.dot_dimension_numbers<[1], [0], [0], [1], [0, 0, 1, 1], [], []>} : vector<1x10xbf16>, vector<10x32xbf16>, vector<1x32xf32> -> vector<1x32xf32>
    %139 = arith.addf %136, %138 : vector<1x32xf32>
    %cst_49 = arith.constant 0.000000e+00 : f32
    %140 = vector.broadcast %cst_49 : f32 to vector<1x32xf32>
    %141 = arith.maximumf %139, %140 : vector<1x32xf32>
    %142 = arith.index_cast %c2_i32 : i32 to index
    %c0_50 = arith.constant 0 : index
    %143 = vector.load %arg14[%142, %c0_50] : memref<4x32xf32, #tpu.memory_space<vmem>>, vector<1x32xf32>
    tpu.vector_store %arg14[%142, %c0_50], %141 {strides = array<i32>} : memref<4x32xf32, #tpu.memory_space<vmem>>, vector<1x32xf32>,
    %144 = vector.extract_strided_slice %121 {offsets = [0, 10], sizes = [1, 32], strides = [1, 1]} : vector<1x106xf32> to vector<1x32xf32>
    %145 = vector.extract_strided_slice %121 {offsets = [0, 42], sizes = [1, 32], strides = [1, 1]} : vector<1x106xf32> to vector<1x32xf32>
    %146 = arith.negf %145 : vector<1x32xf32>
    %147 = math.exp %146 : vector<1x32xf32>
    %cst_51 = arith.constant 1.000000e+00 : f32
    %148 = vector.broadcast %cst_51 : f32 to vector<1x32xf32>
    %149 = arith.addf %148, %147 : vector<1x32xf32>
    %150 = arith.divf %148, %149 : vector<1x32xf32>
    %151 = vector.extract_strided_slice %121 {offsets = [0, 74], sizes = [1, 32], strides = [1, 1]} : vector<1x106xf32> to vector<1x32xf32>
    %152 = arith.negf %151 : vector<1x32xf32>
    %153 = math.exp %152 : vector<1x32xf32>
    %cst_52 = arith.constant 1.000000e+00 : f32
    %154 = vector.broadcast %cst_52 : f32 to vector<1x32xf32>
    %155 = arith.addf %154, %153 : vector<1x32xf32>
    %156 = arith.divf %154, %155 : vector<1x32xf32>
    %157 = arith.mulf %150, %110 : vector<1x32xf32>
    %cst_53 = arith.constant 1.000000e+00 : f32
    %158 = vector.broadcast %cst_53 : f32 to vector<1x32xf32>
    %159 = arith.subf %158, %150 : vector<1x32xf32>
    %160 = arith.mulf %159, %144 : vector<1x32xf32>
    %161 = arith.addf %157, %160 : vector<1x32xf32>
    %162 = math.tanh %161 : vector<1x32xf32>
    %163 = arith.mulf %156, %162 : vector<1x32xf32>
    %cst_54 = arith.constant 1.000000e+00 : f32
    %164 = vector.broadcast %cst_54 : f32 to vector<1x32xf32>
    %165 = arith.subf %164, %156 : vector<1x32xf32>
    %166 = arith.mulf %165, %116 : vector<1x32xf32>
    %167 = arith.addf %163, %166 : vector<1x32xf32>
    %c3_i32 = arith.constant 3 : i32
    %168 = arith.index_cast %c3_i32 : i32 to index
    %c0_55 = arith.constant 0 : index
    %169 = vector.load %arg13[%168, %c0_55] : memref<4x42xf32, #tpu.memory_space<vmem>>, vector<1x42xf32>
    %170 = arith.truncf %167 : vector<1x32xf32> to vector<1x32xbf16>
    %cst_56 = arith.constant dense<0.000000e+00> : vector<1x106xf32>
    %171 = tpu.matmul %170, %11, %cst_56 {dimension_numbers = #tpu.dot_dimension_numbers<[1], [0], [0], [1], [0, 0, 1, 1], [], []>} : vector<1x32xbf16>, vector<32x106xbf16>, vector<1x106xf32> -> vector<1x106xf32>
    %172 = arith.addf %171, %12 : vector<1x106xf32>
    %173 = vector.extract_strided_slice %169 {offsets = [0, 0], sizes = [1, 10], strides = [1, 1]} : vector<1x42xf32> to vector<1x10xf32>
    %174 = vector.extract_strided_slice %172 {offsets = [0, 0], sizes = [1, 10], strides = [1, 1]} : vector<1x106xf32> to vector<1x10xf32>
    %175 = arith.addf %173, %174 : vector<1x10xf32>
    %cst_57 = arith.constant dense<0xFF800000> : vector<1xf32>
    %176 = vector.multi_reduction <maximumf>, %175, %cst_57 [1] : vector<1x10xf32> to vector<1xf32>
    %177 = vector.shape_cast %176 : vector<1xf32> to vector<1x1xf32>
    %178 = vector.broadcast %177 : vector<1x1xf32> to vector<1x10xf32>
    %179 = arith.subf %175, %178 : vector<1x10xf32>
    %180 = math.exp %179 : vector<1x10xf32>
    %cst_58 = arith.constant dense<0.000000e+00> : vector<1xf32>
    %181 = vector.multi_reduction <add>, %180, %cst_58 [1] : vector<1x10xf32> to vector<1xf32>
    %182 = vector.shape_cast %181 : vector<1xf32> to vector<1x1xf32>
    %183 = vector.broadcast %182 : vector<1x1xf32> to vector<1x10xf32>
    %184 = arith.divf %180, %183 : vector<1x10xf32>
    %185 = arith.index_cast %c3_i32 : i32 to index
    %c0_59 = arith.constant 0 : index
    %186 = vector.load %arg11[%185, %c0_59] : memref<4x10xf32, #tpu.memory_space<vmem>>, vector<1x10xf32>
    tpu.vector_store %arg11[%185, %c0_59], %184 {strides = array<i32>} : memref<4x10xf32, #tpu.memory_space<vmem>>, vector<1x10xf32>,
    %187 = vector.extract_strided_slice %169 {offsets = [0, 10], sizes = [1, 32], strides = [1, 1]} : vector<1x42xf32> to vector<1x32xf32>
    %188 = arith.truncf %184 : vector<1x10xf32> to vector<1x10xbf16>
    %cst_60 = arith.constant dense<0.000000e+00> : vector<1x32xf32>
    %189 = tpu.matmul %188, %10, %cst_60 {dimension_numbers = #tpu.dot_dimension_numbers<[1], [0], [0], [1], [0, 0, 1, 1], [], []>} : vector<1x10xbf16>, vector<10x32xbf16>, vector<1x32xf32> -> vector<1x32xf32>
    %190 = arith.addf %187, %189 : vector<1x32xf32>
    %cst_61 = arith.constant 0.000000e+00 : f32
    %191 = vector.broadcast %cst_61 : f32 to vector<1x32xf32>
    %192 = arith.maximumf %190, %191 : vector<1x32xf32>
    %193 = arith.index_cast %c3_i32 : i32 to index
    %c0_62 = arith.constant 0 : index
    %194 = vector.load %arg14[%193, %c0_62] : memref<4x32xf32, #tpu.memory_space<vmem>>, vector<1x32xf32>
    tpu.vector_store %arg14[%193, %c0_62], %192 {strides = array<i32>} : memref<4x32xf32, #tpu.memory_space<vmem>>, vector<1x32xf32>,
    %195 = vector.extract_strided_slice %172 {offsets = [0, 10], sizes = [1, 32], strides = [1, 1]} : vector<1x106xf32> to vector<1x32xf32>
    %196 = vector.extract_strided_slice %172 {offsets = [0, 42], sizes = [1, 32], strides = [1, 1]} : vector<1x106xf32> to vector<1x32xf32>
    %197 = arith.negf %196 : vector<1x32xf32>
    %198 = math.exp %197 : vector<1x32xf32>
    %cst_63 = arith.constant 1.000000e+00 : f32
    %199 = vector.broadcast %cst_63 : f32 to vector<1x32xf32>
    %200 = arith.addf %199, %198 : vector<1x32xf32>
    %201 = arith.divf %199, %200 : vector<1x32xf32>
    %202 = vector.extract_strided_slice %172 {offsets = [0, 74], sizes = [1, 32], strides = [1, 1]} : vector<1x106xf32> to vector<1x32xf32>
    %203 = arith.negf %202 : vector<1x32xf32>
    %204 = math.exp %203 : vector<1x32xf32>
    %cst_64 = arith.constant 1.000000e+00 : f32
    %205 = vector.broadcast %cst_64 : f32 to vector<1x32xf32>
    %206 = arith.addf %205, %204 : vector<1x32xf32>
    %207 = arith.divf %205, %206 : vector<1x32xf32>
    %208 = arith.mulf %201, %161 : vector<1x32xf32>
    %cst_65 = arith.constant 1.000000e+00 : f32
    %209 = vector.broadcast %cst_65 : f32 to vector<1x32xf32>
    %210 = arith.subf %209, %201 : vector<1x32xf32>
    %211 = arith.mulf %210, %195 : vector<1x32xf32>
    %212 = arith.addf %208, %211 : vector<1x32xf32>
    %213 = math.tanh %212 : vector<1x32xf32>
    %214 = arith.mulf %207, %213 : vector<1x32xf32>
    %cst_66 = arith.constant 1.000000e+00 : f32
    %215 = vector.broadcast %cst_66 : f32 to vector<1x32xf32>
    %216 = arith.subf %215, %207 : vector<1x32xf32>
    %217 = arith.mulf %216, %167 : vector<1x32xf32>
    %218 = arith.addf %214, %217 : vector<1x32xf32>
    %c4_i32 = arith.constant 4 : i32
    %c0_67 = arith.constant 0 : index
    %c0_68 = arith.constant 0 : index
    %219 = vector.load %arg9[%c0_67, %c0_68] : memref<1x32xf32, #tpu.memory_space<vmem>>, vector<1x32xf32>
    tpu.vector_store %arg9[%c0_67, %c0_68], %218 {strides = array<i32>} : memref<1x32xf32, #tpu.memory_space<vmem>>, vector<1x32xf32>,
    %c0_69 = arith.constant 0 : index
    %c0_70 = arith.constant 0 : index
    %220 = vector.load %arg10[%c0_69, %c0_70] : memref<1x32xf32, #tpu.memory_space<vmem>>, vector<1x32xf32>
    tpu.vector_store %arg10[%c0_69, %c0_70], %212 {strides = array<i32>} : memref<1x32xf32, #tpu.memory_space<vmem>>, vector<1x32xf32>,
    %c0_71 = arith.constant 0 : index
    %c0_72 = arith.constant 0 : index
    %221 = vector.load %arg14[%c0_71, %c0_72] : memref<4x32xf32, #tpu.memory_space<vmem>>, vector<4x32xf32>
    %222 = arith.truncf %221 : vector<4x32xf32> to vector<4x32xbf16>
    %c0_73 = arith.constant 0 : index
    %c0_74 = arith.constant 0 : index
    %223 = vector.load %arg7[%c0_73, %c0_74] : memref<32x20xbf16, #tpu.memory_space<vmem>>, vector<32x20xbf16>
    %cst_75 = arith.constant dense<0.000000e+00> : vector<4x20xf32>
    %224 = tpu.matmul %222, %223, %cst_75 {dimension_numbers = #tpu.dot_dimension_numbers<[1], [0], [0], [1], [0, 0, 1, 1], [], []>} : vector<4x32xbf16>, vector<32x20xbf16>, vector<4x20xf32> -> vector<4x20xf32>
    %c2 = arith.constant 2 : index
    %c0_76 = arith.constant 0 : index
    %225 = vector.load %arg8[%c2, %c0_76] : memref<3x128xf32, #tpu.memory_space<vmem>>, vector<1x20xf32>
    %226 = vector.broadcast %225 : vector<1x20xf32> to vector<4x20xf32>
    %227 = arith.addf %224, %226 : vector<4x20xf32>
    %cst_77 = arith.constant dense<0xFF800000> : vector<4xf32>
    %228 = vector.multi_reduction <maximumf>, %227, %cst_77 [1] : vector<4x20xf32> to vector<4xf32>
    %229 = vector.shape_cast %228 : vector<4xf32> to vector<4x1xf32>
    %230 = vector.broadcast %229 : vector<4x1xf32> to vector<4x20xf32>
    %231 = arith.subf %227, %230 : vector<4x20xf32>
    %232 = math.exp %231 : vector<4x20xf32>
    %cst_78 = arith.constant dense<0.000000e+00> : vector<4xf32>
    %233 = vector.multi_reduction <add>, %232, %cst_78 [1] : vector<4x20xf32> to vector<4xf32>
    %234 = vector.shape_cast %233 : vector<4xf32> to vector<4x1xf32>
    %235 = math.log %234 : vector<4x1xf32>
    %236 = arith.addf %229, %235 : vector<4x1xf32>
    %237 = vector.broadcast %236 : vector<4x1xf32> to vector<4x20xf32>
    %238 = arith.subf %227, %237 : vector<4x20xf32>
    %c0_79 = arith.constant 0 : index
    %c0_80 = arith.constant 0 : index
    %239 = vector.load %arg12[%c0_79, %c0_80] : memref<4x20xf32, #tpu.memory_space<vmem>>, vector<4x20xf32>
    tpu.vector_store %arg12[%c0_79, %c0_80], %238 {strides = array<i32>} : memref<4x20xf32, #tpu.memory_space<vmem>>, vector<4x20xf32>,
    return
  }
  func.func @transform_0(%arg0: i32) -> (i32, i32) {
    %c0_i32 = arith.constant 0 : i32
    %c0_i32_0 = arith.constant 0 : i32
    %c0_i32_1 = arith.constant 0 : i32
    return %c0_i32, %c0_i32_0 : i32, i32
  }
  func.func @transform_1(%arg0: i32) -> (i32, i32) {
    %c0_i32 = arith.constant 0 : i32
    %c0_i32_0 = arith.constant 0 : i32
    %c0_i32_1 = arith.constant 0 : i32
    return %c0_i32, %c0_i32_0 : i32, i32
  }
  func.func @transform_2(%arg0: i32) -> (i32, i32) {
    %c0_i32 = arith.constant 0 : i32
    %c0_i32_0 = arith.constant 0 : i32
    %c0_i32_1 = arith.constant 0 : i32
    return %c0_i32, %c0_i32_0 : i32, i32
  }
  func.func @transform_3(%arg0: i32) -> (i32, i32) {
    %c0_i32 = arith.constant 0 : i32
    %c0_i32_0 = arith.constant 0 : i32
    %c0_i32_1 = arith.constant 0 : i32
    return %c0_i32, %c0_i32_0 : i32, i32
  }
  func.func @transform_4(%arg0: i32) -> (i32, i32) {
    %c0_i32 = arith.constant 0 : i32
    %c0_i32_0 = arith.constant 0 : i32
    %c0_i32_1 = arith.constant 0 : i32
    return %c0_i32, %c0_i32_0 : i32, i32
  }
  func.func @transform_5(%arg0: i32) -> (i32, i32) {
    %c0_i32 = arith.constant 0 : i32
    %c0_i32_0 = arith.constant 0 : i32
    %c0_i32_1 = arith.constant 0 : i32
    return %c0_i32, %c0_i32_0 : i32, i32
  }
  func.func @transform_6(%arg0: i32) -> (i32, i32) {
    %c0_i32 = arith.constant 0 : i32
    %c0_i32_0 = arith.constant 0 : i32
    %c0_i32_1 = arith.constant 0 : i32
    return %c0_i32, %c0_i32_0 : i32, i32
  }
  func.func @transform_7(%arg0: i32) -> (i32, i32) {
    %c0_i32 = arith.constant 0 : i32
    %c0_i32_0 = arith.constant 0 : i32
    %c0_i32_1 = arith.constant 0 : i32
    return %c0_i32, %c0_i32_0 : i32, i32
  }
  func.func @transform_8(%arg0: i32) -> (i32, i32) {
    %c0_i32 = arith.constant 0 : i32
    %c0_i32_0 = arith.constant 0 : i32
    %c0_i32_1 = arith.constant 0 : i32
    return %c0_i32, %c0_i32_0 : i32, i32
  }
  func.func @transform_9(%arg0: i32) -> (i32, i32) {
    %c0_i32 = arith.constant 0 : i32
    %c0_i32_0 = arith.constant 0 : i32
    %c0_i32_1 = arith.constant 0 : i32
    return %c0_i32, %c0_i32_0 : i32, i32
  }
  func.func @transform_10(%arg0: i32) -> (i32, i32) {
    %c0_i32 = arith.constant 0 : i32
    %c0_i32_0 = arith.constant 0 : i32
    %c0_i32_1 = arith.constant 0 : i32
    return %c0_i32, %c0_i32_0 : i32, i32
  }
  func.func @transform_11(%arg0: i32) -> (i32, i32) {
    %c0_i32 = arith.constant 0 : i32
    %c0_i32_0 = arith.constant 0 : i32
    %c0_i32_1 = arith.constant 0 : i32
    return %c0_i32, %c0_i32_0 : i32, i32
  }
}

</mosaic_0001>

<llo_original>
// kernel: attn_decoder_decode.1
$region0: #{attn_decoder_decode.1}
  #allocation0 [shape = 'u32[]', space=smem, size = 0x4, offset = 0x4, fixed_abs, tag = 'smem constant byte address 0x4 - core index']
  #allocation1 [shape = 'u32[144,128]{1,0:T(1,128)}', space=vmem, size = 0x12000, scoped, tag = 'internal scratch']
  #allocation2 [shape = 'f32[4,42]{1,0:T(4,128)}', space=vmem, size = 0x800, scoped, tag = 'scratch operand']
  #allocation3 [shape = 'f32[4,32]{1,0:T(4,128)}', space=vmem, size = 0x800, scoped, tag = 'scratch operand']
  %s0 = inlined_call_operand.vmem [shape: bf16[4,32], index: 0, kind: input, shape index: {}]
  %s1 = inlined_call_operand.vmem [shape: f32[2,32], index: 1, kind: input, shape index: {}]
  %s2 = inlined_call_operand.vmem [shape: bf16[10,32], index: 2, kind: input, shape index: {}]
  %s3 = inlined_call_operand.vmem [shape: bf16[32,42], index: 3, kind: input, shape index: {}]
  %s4 = inlined_call_operand.vmem [shape: bf16[32,106], index: 4, kind: input, shape index: {}]
  %s5 = inlined_call_operand.vmem [shape: bf16[32,32], index: 5, kind: input, shape index: {}]
  %s6 = inlined_call_operand.vmem [shape: bf16[32,20], index: 6, kind: input, shape index: {}]
  %s7 = inlined_call_operand.vmem [shape: f32[3,128], index: 7, kind: input, shape index: {}]
  %s8 = inlined_call_operand.hbm [shape: f32[1,32], index: 8, kind: output, shape index: {0}]
  %s9 = inlined_call_operand.hbm [shape: f32[1,32], index: 9, kind: output, shape index: {1}]
  %s10 = inlined_call_operand.hbm [shape: f32[4,10], index: 10, kind: output, shape index: {2}]
  %s11 = inlined_call_operand.hbm [shape: f32[4,20], index: 11, kind: output, shape index: {3}]
  %12 = xla_tuple %s8, %s9, %s10, %s11
  %s13 = sld [smem:[#allocation0]]
  $region66: #{attn_decoder_decode.1} parent=0
    _
  %s15 = ssub.s32 1, %s13
  %s16 = scalar_select 0, %s15, %s13
  $region1: #{attn_decoder_decode.1} parent=0
    #allocation4 [shape = 'u8[512]{0}', space=vmem, size = 0x400, scoped, tag = 'output window, operand 0, single buffered']
    #allocation5 [shape = 's32[1]{0}', space=sflag, size = 0x4, scoped, tag = 'scoped memory for attn_decoder_decode.1']
    #allocation6 [shape = 'u8[512]{0}', space=vmem, size = 0x400, scoped, tag = 'output window, operand 1, single buffered']
    #allocation7 [shape = 's32[1]{0}', space=sflag, size = 0x4, scoped, tag = 'scoped memory for attn_decoder_decode.1']
    #allocation8 [shape = 'u8[2048]{0}', space=vmem, size = 0x800, scoped, tag = 'output window, operand 2, single buffered']
    #allocation9 [shape = 'u8[2048]{0}', space=vmem, size = 0x800, scoped, tag = 'output window, operand 3, single buffered']
    #allocation10 [shape = 's32[1]{0}', space=sflag, size = 0x4, scoped, tag = 'scoped memory for attn_decoder_decode.1']
    %17 = vsyncpa [#allocation5], 0
    %18 = vsyncpa [#allocation7], 0
    %19 = vsyncpa [#allocation10], 0
    // Predicated region
    $region2: #{attn_decoder_decode.1} parent=1 // pred_check
      _
    $region3: #{attn_decoder_decode.1} parent=1 // pred_check_branch
      %21 = sbr.rel (0) target = $region5
    $region4: #{attn_decoder_decode.1} parent=1 // pred_region
      _
    $region5: #{attn_decoder_decode.1} parent=1 // pred_fallthru
      _
    // Predicated region
    $region6: #{attn_decoder_decode.1} parent=1 // pred_check
      _
    $region7: #{attn_decoder_decode.1} parent=1 // pred_check_branch
      %23 = sbr.rel (0) target = $region9
    $region8: #{attn_decoder_decode.1} parent=1 // pred_region
      _
    $region9: #{attn_decoder_decode.1} parent=1 // pred_fallthru
      _
    // Predicated region
    $region10: #{attn_decoder_decode.1} parent=1 // pred_check
      _
    $region11: #{attn_decoder_decode.1} parent=1 // pred_check_branch
      %25 = sbr.rel (0) target = $region13
    $region12: #{attn_decoder_decode.1} parent=1 // pred_region
      _
    $region13: #{attn_decoder_decode.1} parent=1 // pred_fallthru
      _
    // Predicated region
    $region14: #{attn_decoder_decode.1} parent=1 // pred_check
      _
    $region15: #{attn_decoder_decode.1} parent=1 // pred_check_branch
      %27 = sbr.rel (0) target = $region17
    $region16: #{attn_decoder_decode.1} parent=1 // pred_region
      _
    $region17: #{attn_decoder_decode.1} parent=1 // pred_fallthru
      _
    // Predicated region
    $region18: #{attn_decoder_decode.1} parent=1 // pred_check
      _
    $region19: #{attn_decoder_decode.1} parent=1 // pred_check_branch
      %29 = sbr.rel (0) target = $region21
    $region20: #{attn_decoder_decode.1} parent=1 // pred_region
      _
    $region21: #{attn_decoder_decode.1} parent=1 // pred_fallthru
      _
    // Predicated region
    $region22: #{attn_decoder_decode.1} parent=1 // pred_check
      _
    $region23: #{attn_decoder_decode.1} parent=1 // pred_check_branch
      %31 = sbr.rel (0) target = $region25
    $region24: #{attn_decoder_decode.1} parent=1 // pred_region
      _
    $region25: #{attn_decoder_decode.1} parent=1 // pred_fallthru
      _
    // Predicated region
    $region26: #{attn_decoder_decode.1} parent=1 // pred_check
      _
    $region27: #{attn_decoder_decode.1} parent=1 // pred_check_branch
      %33 = sbr.rel (0) target = $region29
    $region28: #{attn_decoder_decode.1} parent=1 // pred_region
      _
    $region29: #{attn_decoder_decode.1} parent=1 // pred_fallthru
      _
    // Predicated region
    $region30: #{attn_decoder_decode.1} parent=1 // pred_check
      _
    $region31: #{attn_decoder_decode.1} parent=1 // pred_check_branch
      %35 = sbr.rel (0) target = $region33
    $region32: #{attn_decoder_decode.1} parent=1 // pred_region
      _
    $region33: #{attn_decoder_decode.1} parent=1 // pred_fallthru
      _
    %v37 = vld [vmem:[%s0] sm:$0x3]
    %v38 = vld [vmem:[%s3] sm:$0xf]
    %v39 = vld [vmem:[%s3 + $0x4] sm:$0xf]
    %v40 = vld [vmem:[%s3 + $0x8] sm:$0xf]
    %v41 = vld [vmem:[%s3 + $0xc] sm:$0xf]
    %v42 = vld [vmem:[%s7] sm:$0x1]
    %v43 = vlaneseq
    %v44 = vshrl.u32 %v43, 7
    %v45 = vsub.s32 0, %v44
    %v46 = vrot.slane %v42, %v45
    %v51 = vunpack.c.l.b16 %v38
    %v52 = vunpack.c.l.b16 %v39
    %v53 = vunpack.c.l.b16 %v40
    %v54 = vunpack.c.l.b16 %v41
    %v55 = vpack.c.b16 %v52, %v51
    %v56 = vpack.c.b16 %v54, %v53
    %vm59 = vcmask 261120
    %v61 = vsel %vm59, %v37, 0
    %63 = vmatprep.subr.bf16.mxu0 0
    %64 = vmatpush1.bf16.msra.mxu0 %v55
    %65 = vmatprep.subr.bf16.mxu0 0
    %66 = vmatpush1.bf16.msra.mxu0 %v56
    %67 = vmatprep.subr.bf16.mxu0 0
    %68 = vmatpush1.bf16.msra.mxu0 0
    %69 = vmatprep.subr.bf16.mxu0 0
    %70 = vmatpush1.bf16.msra.mxu0 0
    %71 = vmatprep.subr.bf16.mxu0 0
    %72 = vmatpush1.bf16.msra.mxu0 0
    %73 = vmatprep.subr.bf16.mxu0 0
    %74 = vmatpush1.bf16.msra.mxu0 0
    %75 = vmatprep.subr.bf16.mxu0 0
    %76 = vmatpush1.bf16.msra.mxu0 0
    %77 = vmatprep.subr.bf16.mxu0 0
    %78 = vmatpush1.bf16.msra.mxu0 0
    %79 = vmatprep.subr.bf16.mxu0 0
    %80 = vmatpush1.bf16.msra.mxu0 0
    %81 = vmatprep.subr.bf16.mxu0 0
    %82 = vmatpush1.bf16.msra.mxu0 0
    %83 = vmatprep.subr.bf16.mxu0 0
    %84 = vmatpush1.bf16.msra.mxu0 0
    %85 = vmatprep.subr.bf16.mxu0 0
    %86 = vmatpush1.bf16.msra.mxu0 0
    %87 = vmatprep.subr.bf16.mxu0 0
    %88 = vmatpush1.bf16.msra.mxu0 0
    %89 = vmatprep.subr.bf16.mxu0 0
    %90 = vmatpush1.bf16.msra.mxu0 0
    %91 = vmatprep.subr.bf16.mxu0 0
    %92 = vmatpush1.bf16.msra.mxu0 0
    %93 = vmatprep.subr.bf16.mxu0 0
    %94 = vmatpush1.bf16.msra.mxu0 0
    %95 = vmatprep.mubr.bf16.mxu0 0
    %96 = vmatmul.mubr.bf16.gmra.mrb[0].mxu0 %v61
    %v97 = vpop.f32.mrb[0].mxu0
    %v98 = vadd.f32 %v46, %v97
    %v99 = vpop.f32.mrb[0].mxu0
    %v100 = vpop.f32.mrb[0].mxu0
    %v101 = vpop.f32.mrb[0].mxu0
    %102 = vdwg.mxu0
    %vm103 = vcmask 338944
    %104 = vst.msk [vmem:[#allocation2] sm:$0xf] %vm103, %v98
    %v105 = vld [vmem:[%s2] sm:$0xf]
    %v106 = vld [vmem:[%s2 + $0x4] sm:$0x1]
    %v107 = vld [vmem:[%s5] sm:$0xf]
    %v108 = vld [vmem:[%s5 + $0x4] sm:$0xf]
    %v109 = vld [vmem:[%s5 + $0x8] sm:$0xf]
    %v110 = vld [vmem:[%s5 + $0xc] sm:$0xf]
    %v113 = vunpack.c.l.b16 %v105
    %v114 = vunpack.c.l.b16 %v106
    %v115 = vpack.c.b16 %v114, %v113
    %v120 = vunpack.c.l.b16 %v107
    %v121 = vunpack.c.l.b16 %v108
    %v122 = vunpack.c.l.b16 %v109
    %v123 = vunpack.c.l.b16 %v110
    %v124 = vpack.c.b16 %v121, %v120
    %v125 = vpack.c.b16 %v123, %v122
    %v129 = vsel %vm59, %v115, 0
    %131 = vmatprep.subr.bf16.mxu0 0
    %132 = vmatpush1.bf16.msra.mxu0 %v124
    %133 = vmatprep.subr.bf16.mxu0 0
    %134 = vmatpush1.bf16.msra.mxu0 %v125
    %135 = vmatprep.subr.bf16.mxu0 0
    %136 = vmatpush1.bf16.msra.mxu0 0
    %137 = vmatprep.subr.bf16.mxu0 0
    %138 = vmatpush1.bf16.msra.mxu0 0
    %139 = vmatprep.subr.bf16.mxu0 0
    %140 = vmatpush1.bf16.msra.mxu0 0
    %141 = vmatprep.subr.bf16.mxu0 0
    %142 = vmatpush1.bf16.msra.mxu0 0
    %143 = vmatprep.subr.bf16.mxu0 0
    %144 = vmatpush1.bf16.msra.mxu0 0
    %145 = vmatprep.subr.bf16.mxu0 0
    %146 = vmatpush1.bf16.msra.mxu0 0
    %147 = vmatprep.subr.bf16.mxu0 0
    %148 = vmatpush1.bf16.msra.mxu0 0
    %149 = vmatprep.subr.bf16.mxu0 0
    %150 = vmatpush1.bf16.msra.mxu0 0
    %151 = vmatprep.subr.bf16.mxu0 0
    %152 = vmatpush1.bf16.msra.mxu0 0
    %153 = vmatprep.subr.bf16.mxu0 0
    %154 = vmatpush1.bf16.msra.mxu0 0
    %155 = vmatprep.subr.bf16.mxu0 0
    %156 = vmatpush1.bf16.msra.mxu0 0
    %157 = vmatprep.subr.bf16.mxu0 0
    %158 = vmatpush1.bf16.msra.mxu0 0
    %159 = vmatprep.subr.bf16.mxu0 0
    %160 = vmatpush1.bf16.msra.mxu0 0
    %161 = vmatprep.subr.bf16.mxu0 0
    %162 = vmatpush1.bf16.msra.mxu0 0
    %163 = vmatprep.mubr.bf16.mxu0 0
    %164 = vmatmul.mubr.bf16.gmra.mrb[0].mxu0 %v129
    %v165 = vpop.f32.mrb[0].mxu0
    %v166 = vadd.f32 0.0, %v165
    %v167 = vpop.f32.mrb[0].mxu0
    %v168 = vpop.f32.mrb[0].mxu0
    %v169 = vadd.f32 0.0, %v168
    %v170 = vpop.f32.mrb[0].mxu0
    %171 = vdwg.mxu0
    %v172 = vpack.c.bf16 %v169, %v166
    %v173 = vld [vmem:[%s4] sm:$0xf]
    %v174 = vld [vmem:[%s4 + $0x4] sm:$0xf]
    %v175 = vld [vmem:[%s4 + $0x8] sm:$0xf]
    %v176 = vld [vmem:[%s4 + $0xc] sm:$0xf]
    %v177 = vld [vmem:[%s7 + $0x1] sm:$0x1]
    %v178 = vld [vmem:[%s1] sm:$0x1]
    %v179 = vld [vmem:[%s1 + $0x1] sm:$0x1]
    %v180 = vld [vmem:[#allocation2] sm:$0x1]
    %v181 = vpack.c.bf16 %v178, %v178
    %v186 = vunpack.c.l.b16 %v173
    %v187 = vunpack.c.l.b16 %v174
    %v188 = vunpack.c.l.b16 %v175
    %v189 = vunpack.c.l.b16 %v176
    %v190 = vpack.c.b16 %v187, %v186
    %v191 = vpack.c.b16 %v189, %v188
    %v195 = vsel %vm59, %v181, 0
    %197 = vmatprep.subr.bf16.mxu0 0
    %198 = vmatpush1.bf16.msra.mxu0 %v190
    %199 = vmatprep.subr.bf16.mxu0 0
    %200 = vmatpush1.bf16.msra.mxu0 %v191
    %201 = vmatprep.subr.bf16.mxu0 0
    %202 = vmatpush1.bf16.msra.mxu0 0
    %203 = vmatprep.subr.bf16.mxu0 0
    %204 = vmatpush1.bf16.msra.mxu0 0
    %205 = vmatprep.subr.bf16.mxu0 0
    %206 = vmatpush1.bf16.msra.mxu0 0
    %207 = vmatprep.subr.bf16.mxu0 0
    %208 = vmatpush1.bf16.msra.mxu0 0
    %209 = vmatprep.subr.bf16.mxu0 0
    %210 = vmatpush1.bf16.msra.mxu0 0
    %211 = vmatprep.subr.bf16.mxu0 0
    %212 = vmatpush1.bf16.msra.mxu0 0
    %213 = vmatprep.subr.bf16.mxu0 0
    %214 = vmatpush1.bf16.msra.mxu0 0
    %215 = vmatprep.subr.bf16.mxu0 0
    %216 = vmatpush1.bf16.msra.mxu0 0
    %217 = vmatprep.subr.bf16.mxu0 0
    %218 = vmatpush1.bf16.msra.mxu0 0
    %219 = vmatprep.subr.bf16.mxu0 0
    %220 = vmatpush1.bf16.msra.mxu0 0
    %221 = vmatprep.subr.bf16.mxu0 0
    %222 = vmatpush1.bf16.msra.mxu0 0
    %223 = vmatprep.subr.bf16.mxu0 0
    %224 = vmatpush1.bf16.msra.mxu0 0
    %225 = vmatprep.subr.bf16.mxu0 0
    %226 = vmatpush1.bf16.msra.mxu0 0
    %227 = vmatprep.subr.bf16.mxu0 0
    %228 = vmatpush1.bf16.msra.mxu0 0
    %229 = vmatprep.mubr.bf16.mxu0 0
    %230 = vmatmul.mubr.bf16.gmra.mrb[0].mxu0 %v195
    %v231 = vpop.f32.mrb[0].mxu0
    %v232 = vadd.f32 %v177, %v231
    %v233 = vpop.f32.mrb[0].mxu0
    %v234 = vpop.f32.mrb[0].mxu0
    %v235 = vpop.f32.mrb[0].mxu0
    %236 = vdwg.mxu0
    %v237 = vadd.f32 %v180, %v232
    %vm238 = vcmask 73728
    %v239 = vsel %vm238, %v237, -inf
    %240 = vmax.xlane.f32.xlu0 %v239
    %v241 = vpop.xlane.xlu0 %240
    %v242 = vsub.f32 %v237, %v241
    %v243 = vmul.f32 %v242, 1.442695
    %v244 = vpow.pop %v243
    %v245 = vsel %vm238, %v244, 0.0
    %246 = vadd.xlane.f32.xlu0 %v245
    %v247 = vpop.xlane.xlu0 %246
    %v248 = vrcp.pop %v247
    %v249 = vmul.f32 %v244, %v248
    %250 = vst.msk [vmem:[#allocation8] sm:$0x1] %vm238, %v249
    %v251 = vpack.c.bf16 %v249, %v249
    %vm252 = vcmask 80896
    %v254 = vsel %vm252, %v251, 0
    %vm256 = vcmask 1044480
    %v258 = vsel %vm256, %v172, 0
    %260 = vmatprep.subr.bf16.mxu0 0
    %261 = vmatpush1.bf16.msra.mxu0 %v258
    %262 = vmatprep.subr.bf16.mxu0 0
    %263 = vmatpush1.bf16.msra.mxu0 0
    %264 = vmatprep.subr.bf16.mxu0 0
    %265 = vmatpush1.bf16.msra.mxu0 0
    %266 = vmatprep.subr.bf16.mxu0 0
    %267 = vmatpush1.bf16.msra.mxu0 0
    %268 = vmatprep.subr.bf16.mxu0 0
    %269 = vmatpush1.bf16.msra.mxu0 0
    %270 = vmatprep.subr.bf16.mxu0 0
    %271 = vmatpush1.bf16.msra.mxu0 0
    %272 = vmatprep.subr.bf16.mxu0 0
    %273 = vmatpush1.bf16.msra.mxu0 0
    %274 = vmatprep.subr.bf16.mxu0 0
    %275 = vmatpush1.bf16.msra.mxu0 0
    %276 = vmatprep.subr.bf16.mxu0 0
    %277 = vmatpush1.bf16.msra.mxu0 0
    %278 = vmatprep.subr.bf16.mxu0 0
    %279 = vmatpush1.bf16.msra.mxu0 0
    %280 = vmatprep.subr.bf16.mxu0 0
    %281 = vmatpush1.bf16.msra.mxu0 0
    %282 = vmatprep.subr.bf16.mxu0 0
    %283 = vmatpush1.bf16.msra.mxu0 0
    %284 = vmatprep.subr.bf16.mxu0 0
    %285 = vmatpush1.bf16.msra.mxu0 0
    %286 = vmatprep.subr.bf16.mxu0 0
    %287 = vmatpush1.bf16.msra.mxu0 0
    %288 = vmatprep.subr.bf16.mxu0 0
    %289 = vmatpush1.bf16.msra.mxu0 0
    %290 = vmatprep.subr.bf16.mxu0 0
    %291 = vmatpush1.bf16.msra.mxu0 0
    %292 = vmatprep.mubr.bf16.mxu0 0
    %293 = vmatmul.mubr.bf16.gmra.mrb[0].mxu0 %v254
    %v294 = vpop.f32.mrb[0].mxu0
    %v295 = vadd.f32 0.0, %v294
    %v296 = vpop.f32.mrb[0].mxu0
    %v297 = vpop.f32.mrb[0].mxu0
    %v298 = vpop.f32.mrb[0].mxu0
    %299 = vdwg.mxu0
    %301 = vrot.lane.b32.xlu0 %v295, 10
    %v302 = vpop.permute.xlu0 %301
    %v304 = vadd.f32 %v180, %v302
    %v305 = vmax.f32 %v304, 0.0
    %307 = vrot.lane.b32.xlu0 %v305, 118
    %v308 = vpop.permute.xlu0 %307
    %vm310 = vcmask 253952
    %311 = vst.msk [vmem:[#allocation3] sm:$0x1] %vm310, %v308
    %v312 = vxor.u32 %v232, 2147483648
    %v313 = vmul.f32 %v312, 1.442695
    %v314 = vpow.pop %v313
    %v315 = vadd.f32 %v314, 1.0
    %v316 = vrcp.pop %v315
    %v317 = vmul.f32 1.0, %v316
    %319 = vrot.lane.b32.xlu0 %v179, 42
    %v320 = vpop.permute.xlu0 %319
    %v322 = vmul.f32 %v317, %v320
    %v323 = vsub.f32 1.0, %v317
    %325 = vrot.lane.b32.xlu0 %v232, 32
    %v326 = vpop.permute.xlu0 %325
    %v328 = vmul.f32 %v323, %v326
    %v329 = vadd.f32 %v322, %v328
    %v330 = vtanh.pop %v329
    %332 = vrot.lane.b32.xlu0 %v330, 32
    %v333 = vpop.permute.xlu0 %332
    %v335 = vmul.f32 %v317, %v333
    %337 = vrot.lane.b32.xlu0 %v178, 74
    %v338 = vpop.permute.xlu0 %337
    %v340 = vmul.f32 %v323, %v338
    %v341 = vadd.f32 %v335, %v340
    %v342 = vld [vmem:[#allocation2 + $0x1] sm:$0x1]
    %v343 = vpack.c.bf16 %v341, %v341
    %345 = vrot.lane.b32.xlu0 %v343, 54
    %v346 = vpop.permute.xlu0 %345
    %v348 = vsel %vm59, %v346, 0
    %350 = vmatprep.subr.bf16.mxu0 0
    %351 = vmatpush1.bf16.msra.mxu0 %v190
    %352 = vmatprep.subr.bf16.mxu0 0
    %353 = vmatpush1.bf16.msra.mxu0 %v191
    %354 = vmatprep.subr.bf16.mxu0 0
    %355 = vmatpush1.bf16.msra.mxu0 0
    %356 = vmatprep.subr.bf16.mxu0 0
    %357 = vmatpush1.bf16.msra.mxu0 0
    %358 = vmatprep.subr.bf16.mxu0 0
    %359 = vmatpush1.bf16.msra.mxu0 0
    %360 = vmatprep.subr.bf16.mxu0 0
    %361 = vmatpush1.bf16.msra.mxu0 0
    %362 = vmatprep.subr.bf16.mxu0 0
    %363 = vmatpush1.bf16.msra.mxu0 0
    %364 = vmatprep.subr.bf16.mxu0 0
    %365 = vmatpush1.bf16.msra.mxu0 0
    %366 = vmatprep.subr.bf16.mxu0 0
    %367 = vmatpush1.bf16.msra.mxu0 0
    %368 = vmatprep.subr.bf16.mxu0 0
    %369 = vmatpush1.bf16.msra.mxu0 0
    %370 = vmatprep.subr.bf16.mxu0 0
    %371 = vmatpush1.bf16.msra.mxu0 0
    %372 = vmatprep.subr.bf16.mxu0 0
    %373 = vmatpush1.bf16.msra.mxu0 0
    %374 = vmatprep.subr.bf16.mxu0 0
    %375 = vmatpush1.bf16.msra.mxu0 0
    %376 = vmatprep.subr.bf16.mxu0 0
    %377 = vmatpush1.bf16.msra.mxu0 0
    %378 = vmatprep.subr.bf16.mxu0 0
    %379 = vmatpush1.bf16.msra.mxu0 0
    %380 = vmatprep.subr.bf16.mxu0 0
    %381 = vmatpush1.bf16.msra.mxu0 0
    %382 = vmatprep.mubr.bf16.mxu0 0
    %383 = vmatmul.mubr.bf16.gmra.mrb[0].mxu0 %v348
    %v384 = vpop.f32.mrb[0].mxu0
    %v385 = vadd.f32 %v177, %v384
    %v386 = vpop.f32.mrb[0].mxu0
    %v387 = vpop.f32.mrb[0].mxu0
    %v388 = vpop.f32.mrb[0].mxu0
    %389 = vdwg.mxu0
    %v390 = vadd.f32 %v342, %v385
    %v391 = vsel %vm238, %v390, -inf
    %392 = vmax.xlane.f32.xlu0 %v391
    %v393 = vpop.xlane.xlu0 %392
    %v394 = vsub.f32 %v390, %v393
    %v395 = vmul.f32 %v394, 1.442695
    %v396 = vpow.pop %v395
    %v397 = vsel %vm238, %v396, 0.0
    %398 = vadd.xlane.f32.xlu0 %v397
    %v399 = vpop.xlane.xlu0 %398
    %v400 = vrcp.pop %v399
    %v401 = vmul.f32 %v396, %v400
    %402 = vst.msk [vmem:[#allocation8 + $0x1] sm:$0x1] %vm238, %v401
    %v403 = vpack.c.bf16 %v401, %v401
    %v405 = vsel %vm252, %v403, 0
    %407 = vmatprep.subr.bf16.mxu0 0
    %408 = vmatpush1.bf16.msra.mxu0 %v258
    %409 = vmatprep.subr.bf16.mxu0 0
    %410 = vmatpush1.bf16.msra.mxu0 0
    %411 = vmatprep.subr.bf16.mxu0 0
    %412 = vmatpush1.bf16.msra.mxu0 0
    %413 = vmatprep.subr.bf16.mxu0 0
    %414 = vmatpush1.bf16.msra.mxu0 0
    %415 = vmatprep.subr.bf16.mxu0 0
    %416 = vmatpush1.bf16.msra.mxu0 0
    %417 = vmatprep.subr.bf16.mxu0 0
    %418 = vmatpush1.bf16.msra.mxu0 0
    %419 = vmatprep.subr.bf16.mxu0 0
    %420 = vmatpush1.bf16.msra.mxu0 0
    %421 = vmatprep.subr.bf16.mxu0 0
    %422 = vmatpush1.bf16.msra.mxu0 0
    %423 = vmatprep.subr.bf16.mxu0 0
    %424 = vmatpush1.bf16.msra.mxu0 0
    %425 = vmatprep.subr.bf16.mxu0 0
    %426 = vmatpush1.bf16.msra.mxu0 0
    %427 = vmatprep.subr.bf16.mxu0 0
    %428 = vmatpush1.bf16.msra.mxu0 0
    %429 = vmatprep.subr.bf16.mxu0 0
    %430 = vmatpush1.bf16.msra.mxu0 0
    %431 = vmatprep.subr.bf16.mxu0 0
    %432 = vmatpush1.bf16.msra.mxu0 0
    %433 = vmatprep.subr.bf16.mxu0 0
    %434 = vmatpush1.bf16.msra.mxu0 0
    %435 = vmatprep.subr.bf16.mxu0 0
    %436 = vmatpush1.bf16.msra.mxu0 0
    %437 = vmatprep.subr.bf16.mxu0 0
    %438 = vmatpush1.bf16.msra.mxu0 0
    %439 = vmatprep.mubr.bf16.mxu0 0
    %440 = vmatmul.mubr.bf16.gmra.mrb[0].mxu0 %v405
    %v441 = vpop.f32.mrb[0].mxu0
    %v442 = vadd.f32 0.0, %v441
    %v443 = vpop.f32.mrb[0].mxu0
    %v444 = vpop.f32.mrb[0].mxu0
    %v445 = vpop.f32.mrb[0].mxu0
    %446 = vdwg.mxu0
    %448 = vrot.lane.b32.xlu0 %v442, 10
    %v449 = vpop.permute.xlu0 %448
    %v451 = vadd.f32 %v342, %v449
    %v452 = vmax.f32 %v451, 0.0
    %454 = vrot.lane.b32.xlu0 %v452, 118
    %v455 = vpop.permute.xlu0 %454
    %457 = vst.msk [vmem:[#allocation3 + $0x1] sm:$0x1] %vm310, %v455
    %v458 = vxor.u32 %v385, 2147483648
    %v459 = vmul.f32 %v458, 1.442695
    %v460 = vpow.pop %v459
    %v461 = vadd.f32 %v460, 1.0
    %v462 = vrcp.pop %v461
    %v463 = vmul.f32 1.0, %v462
    %v464 = vmul.f32 %v463, %v329
    %v465 = vsub.f32 1.0, %v463
    %467 = vrot.lane.b32.xlu0 %v385, 32
    %v468 = vpop.permute.xlu0 %467
    %v470 = vmul.f32 %v465, %v468
    %v471 = vadd.f32 %v464, %v470
    %v472 = vtanh.pop %v471
    %474 = vrot.lane.b32.xlu0 %v472, 32
    %v475 = vpop.permute.xlu0 %474
    %v477 = vmul.f32 %v463, %v475
    %v478 = vmul.f32 %v465, %v341
    %v479 = vadd.f32 %v477, %v478
    %v480 = vld [vmem:[#allocation2 + $0x2] sm:$0x1]
    %v481 = vpack.c.bf16 %v479, %v479
    %483 = vrot.lane.b32.xlu0 %v481, 54
    %v484 = vpop.permute.xlu0 %483
    %v486 = vsel %vm59, %v484, 0
    %488 = vmatprep.subr.bf16.mxu0 0
    %489 = vmatpush1.bf16.msra.mxu0 %v190
    %490 = vmatprep.subr.bf16.mxu0 0
    %491 = vmatpush1.bf16.msra.mxu0 %v191
    %492 = vmatprep.subr.bf16.mxu0 0
    %493 = vmatpush1.bf16.msra.mxu0 0
    %494 = vmatprep.subr.bf16.mxu0 0
    %495 = vmatpush1.bf16.msra.mxu0 0
    %496 = vmatprep.subr.bf16.mxu0 0
    %497 = vmatpush1.bf16.msra.mxu0 0
    %498 = vmatprep.subr.bf16.mxu0 0
    %499 = vmatpush1.bf16.msra.mxu0 0
    %500 = vmatprep.subr.bf16.mxu0 0
    %501 = vmatpush1.bf16.msra.mxu0 0
    %502 = vmatprep.subr.bf16.mxu0 0
    %503 = vmatpush1.bf16.msra.mxu0 0
    %504 = vmatprep.subr.bf16.mxu0 0
    %505 = vmatpush1.bf16.msra.mxu0 0
    %506 = vmatprep.subr.bf16.mxu0 0
    %507 = vmatpush1.bf16.msra.mxu0 0
    %508 = vmatprep.subr.bf16.mxu0 0
    %509 = vmatpush1.bf16.msra.mxu0 0
    %510 = vmatprep.subr.bf16.mxu0 0
    %511 = vmatpush1.bf16.msra.mxu0 0
    %512 = vmatprep.subr.bf16.mxu0 0
    %513 = vmatpush1.bf16.msra.mxu0 0
    %514 = vmatprep.subr.bf16.mxu0 0
    %515 = vmatpush1.bf16.msra.mxu0 0
    %516 = vmatprep.subr.bf16.mxu0 0
    %517 = vmatpush1.bf16.msra.mxu0 0
    %518 = vmatprep.subr.bf16.mxu0 0
    %519 = vmatpush1.bf16.msra.mxu0 0
    %520 = vmatprep.mubr.bf16.mxu0 0
    %521 = vmatmul.mubr.bf16.gmra.mrb[0].mxu0 %v486
    %v522 = vpop.f32.mrb[0].mxu0
    %v523 = vadd.f32 %v177, %v522
    %v524 = vpop.f32.mrb[0].mxu0
    %v525 = vpop.f32.mrb[0].mxu0
    %v526 = vpop.f32.mrb[0].mxu0
    %527 = vdwg.mxu0
    %v528 = vadd.f32 %v480, %v523
    %v529 = vsel %vm238, %v528, -inf
    %530 = vmax.xlane.f32.xlu0 %v529
    %v531 = vpop.xlane.xlu0 %530
    %v532 = vsub.f32 %v528, %v531
    %v533 = vmul.f32 %v532, 1.442695
    %v534 = vpow.pop %v533
    %v535 = vsel %vm238, %v534, 0.0
    %536 = vadd.xlane.f32.xlu0 %v535
    %v537 = vpop.xlane.xlu0 %536
    %v538 = vrcp.pop %v537
    %v539 = vmul.f32 %v534, %v538
    %540 = vst.msk [vmem:[#allocation8 + $0x2] sm:$0x1] %vm238, %v539
    %v541 = vpack.c.bf16 %v539, %v539
    %v543 = vsel %vm252, %v541, 0
    %545 = vmatprep.subr.bf16.mxu0 0
    %546 = vmatpush1.bf16.msra.mxu0 %v258
    %547 = vmatprep.subr.bf16.mxu0 0
    %548 = vmatpush1.bf16.msra.mxu0 0
    %549 = vmatprep.subr.bf16.mxu0 0
    %550 = vmatpush1.bf16.msra.mxu0 0
    %551 = vmatprep.subr.bf16.mxu0 0
    %552 = vmatpush1.bf16.msra.mxu0 0
    %553 = vmatprep.subr.bf16.mxu0 0
    %554 = vmatpush1.bf16.msra.mxu0 0
    %555 = vmatprep.subr.bf16.mxu0 0
    %556 = vmatpush1.bf16.msra.mxu0 0
    %557 = vmatprep.subr.bf16.mxu0 0
    %558 = vmatpush1.bf16.msra.mxu0 0
    %559 = vmatprep.subr.bf16.mxu0 0
    %560 = vmatpush1.bf16.msra.mxu0 0
    %561 = vmatprep.subr.bf16.mxu0 0
    %562 = vmatpush1.bf16.msra.mxu0 0
    %563 = vmatprep.subr.bf16.mxu0 0
    %564 = vmatpush1.bf16.msra.mxu0 0
    %565 = vmatprep.subr.bf16.mxu0 0
    %566 = vmatpush1.bf16.msra.mxu0 0
    %567 = vmatprep.subr.bf16.mxu0 0
    %568 = vmatpush1.bf16.msra.mxu0 0
    %569 = vmatprep.subr.bf16.mxu0 0
    %570 = vmatpush1.bf16.msra.mxu0 0
    %571 = vmatprep.subr.bf16.mxu0 0
    %572 = vmatpush1.bf16.msra.mxu0 0
    %573 = vmatprep.subr.bf16.mxu0 0
    %574 = vmatpush1.bf16.msra.mxu0 0
    %575 = vmatprep.subr.bf16.mxu0 0
    %576 = vmatpush1.bf16.msra.mxu0 0
    %577 = vmatprep.mubr.bf16.mxu0 0
    %578 = vmatmul.mubr.bf16.gmra.mrb[0].mxu0 %v543
    %v579 = vpop.f32.mrb[0].mxu0
    %v580 = vadd.f32 0.0, %v579
    %v581 = vpop.f32.mrb[0].mxu0
    %v582 = vpop.f32.mrb[0].mxu0
    %v583 = vpop.f32.mrb[0].mxu0
    %584 = vdwg.mxu0
    %586 = vrot.lane.b32.xlu0 %v580, 10
    %v587 = vpop.permute.xlu0 %586
    %v589 = vadd.f32 %v480, %v587
    %v590 = vmax.f32 %v589, 0.0
    %592 = vrot.lane.b32.xlu0 %v590, 118
    %v593 = vpop.permute.xlu0 %592
    %595 = vst.msk [vmem:[#allocation3 + $0x2] sm:$0x1] %vm310, %v593
    %v596 = vxor.u32 %v523, 2147483648
    %v597 = vmul.f32 %v596, 1.442695
    %v598 = vpow.pop %v597
    %v599 = vadd.f32 %v598, 1.0
    %v600 = vrcp.pop %v599
    %v601 = vmul.f32 1.0, %v600
    %v602 = vmul.f32 %v601, %v471
    %v603 = vsub.f32 1.0, %v601
    %605 = vrot.lane.b32.xlu0 %v523, 32
    %v606 = vpop.permute.xlu0 %605
    %v608 = vmul.f32 %v603, %v606
    %v609 = vadd.f32 %v602, %v608
    %v610 = vtanh.pop %v609
    %612 = vrot.lane.b32.xlu0 %v610, 32
    %v613 = vpop.permute.xlu0 %612
    %v615 = vmul.f32 %v601, %v613
    %v616 = vmul.f32 %v603, %v479
    %v617 = vadd.f32 %v615, %v616
    %v618 = vld [vmem:[#allocation2 + $0x3] sm:$0x1]
    %v619 = vpack.c.bf16 %v617, %v617
    %621 = vrot.lane.b32.xlu0 %v619, 54
    %v622 = vpop.permute.xlu0 %621
    %v624 = vsel %vm59, %v622, 0
    %626 = vmatprep.subr.bf16.mxu0 0
    %627 = vmatpush1.bf16.msra.mxu0 %v190
    %628 = vmatprep.subr.bf16.mxu0 0
    %629 = vmatpush1.bf16.msra.mxu0 %v191
    %630 = vmatprep.subr.bf16.mxu0 0
    %631 = vmatpush1.bf16.msra.mxu0 0
    %632 = vmatprep.subr.bf16.mxu0 0
    %633 = vmatpush1.bf16.msra.mxu0 0
    %634 = vmatprep.subr.bf16.mxu0 0
    %635 = vmatpush1.bf16.msra.mxu0 0
    %636 = vmatprep.subr.bf16.mxu0 0
    %637 = vmatpush1.bf16.msra.mxu0 0
    %638 = vmatprep.subr.bf16.mxu0 0
    %639 = vmatpush1.bf16.msra.mxu0 0
    %640 = vmatprep.subr.bf16.mxu0 0
    %641 = vmatpush1.bf16.msra.mxu0 0
    %642 = vmatprep.subr.bf16.mxu0 0
    %643 = vmatpush1.bf16.msra.mxu0 0
    %644 = vmatprep.subr.bf16.mxu0 0
    %645 = vmatpush1.bf16.msra.mxu0 0
    %646 = vmatprep.subr.bf16.mxu0 0
    %647 = vmatpush1.bf16.msra.mxu0 0
    %648 = vmatprep.subr.bf16.mxu0 0
    %649 = vmatpush1.bf16.msra.mxu0 0
    %650 = vmatprep.subr.bf16.mxu0 0
    %651 = vmatpush1.bf16.msra.mxu0 0
    %652 = vmatprep.subr.bf16.mxu0 0
    %653 = vmatpush1.bf16.msra.mxu0 0
    %654 = vmatprep.subr.bf16.mxu0 0
    %655 = vmatpush1.bf16.msra.mxu0 0
    %656 = vmatprep.subr.bf16.mxu0 0
    %657 = vmatpush1.bf16.msra.mxu0 0
    %658 = vmatprep.mubr.bf16.mxu0 0
    %659 = vmatmul.mubr.bf16.gmra.mrb[0].mxu0 %v624
    %v660 = vpop.f32.mrb[0].mxu0
    %v661 = vadd.f32 %v177, %v660
    %v662 = vpop.f32.mrb[0].mxu0
    %v663 = vpop.f32.mrb[0].mxu0
    %v664 = vpop.f32.mrb[0].mxu0
    %665 = vdwg.mxu0
    %v666 = vadd.f32 %v618, %v661
    %v667 = vsel %vm238, %v666, -inf
    %668 = vmax.xlane.f32.xlu0 %v667
    %v669 = vpop.xlane.xlu0 %668
    %v670 = vsub.f32 %v666, %v669
    %v671 = vmul.f32 %v670, 1.442695
    %v672 = vpow.pop %v671
    %v673 = vsel %vm238, %v672, 0.0
    %674 = vadd.xlane.f32.xlu0 %v673
    %v675 = vpop.xlane.xlu0 %674
    %v676 = vrcp.pop %v675
    %v677 = vmul.f32 %v672, %v676
    %678 = vst.msk [vmem:[#allocation8 + $0x3] sm:$0x1] %vm238, %v677
    %v679 = vpack.c.bf16 %v677, %v677
    %v681 = vsel %vm252, %v679, 0
    %683 = vmatprep.subr.bf16.mxu0 0
    %684 = vmatpush1.bf16.msra.mxu0 %v258
    %685 = vmatprep.subr.bf16.mxu0 0
    %686 = vmatpush1.bf16.msra.mxu0 0
    %687 = vmatprep.subr.bf16.mxu0 0
    %688 = vmatpush1.bf16.msra.mxu0 0
    %689 = vmatprep.subr.bf16.mxu0 0
    %690 = vmatpush1.bf16.msra.mxu0 0
    %691 = vmatprep.subr.bf16.mxu0 0
    %692 = vmatpush1.bf16.msra.mxu0 0
    %693 = vmatprep.subr.bf16.mxu0 0
    %694 = vmatpush1.bf16.msra.mxu0 0
    %695 = vmatprep.subr.bf16.mxu0 0
    %696 = vmatpush1.bf16.msra.mxu0 0
    %697 = vmatprep.subr.bf16.mxu0 0
    %698 = vmatpush1.bf16.msra.mxu0 0
    %699 = vmatprep.subr.bf16.mxu0 0
    %700 = vmatpush1.bf16.msra.mxu0 0
    %701 = vmatprep.subr.bf16.mxu0 0
    %702 = vmatpush1.bf16.msra.mxu0 0
    %703 = vmatprep.subr.bf16.mxu0 0
    %704 = vmatpush1.bf16.msra.mxu0 0
    %705 = vmatprep.subr.bf16.mxu0 0
    %706 = vmatpush1.bf16.msra.mxu0 0
    %707 = vmatprep.subr.bf16.mxu0 0
    %708 = vmatpush1.bf16.msra.mxu0 0
    %709 = vmatprep.subr.bf16.mxu0 0
    %710 = vmatpush1.bf16.msra.mxu0 0
    %711 = vmatprep.subr.bf16.mxu0 0
    %712 = vmatpush1.bf16.msra.mxu0 0
    %713 = vmatprep.subr.bf16.mxu0 0
    %714 = vmatpush1.bf16.msra.mxu0 0
    %715 = vmatprep.mubr.bf16.mxu0 0
    %716 = vmatmul.mubr.bf16.gmra.mrb[0].mxu0 %v681
    %v717 = vpop.f32.mrb[0].mxu0
    %v718 = vadd.f32 0.0, %v717
    %v719 = vpop.f32.mrb[0].mxu0
    %v720 = vpop.f32.mrb[0].mxu0
    %v721 = vpop.f32.mrb[0].mxu0
    %722 = vdwg.mxu0
    %724 = vrot.lane.b32.xlu0 %v718, 10
    %v725 = vpop.permute.xlu0 %724
    %v727 = vadd.f32 %v618, %v725
    %v728 = vmax.f32 %v727, 0.0
    %730 = vrot.lane.b32.xlu0 %v728, 118
    %v731 = vpop.permute.xlu0 %730
    %733 = vst.msk [vmem:[#allocation3 + $0x3] sm:$0x1] %vm310, %v731
    %v734 = vxor.u32 %v661, 2147483648
    %v735 = vmul.f32 %v734, 1.442695
    %v736 = vpow.pop %v735
    %v737 = vadd.f32 %v736, 1.0
    %v738 = vrcp.pop %v737
    %v739 = vmul.f32 1.0, %v738
    %v740 = vmul.f32 %v739, %v609
    %v741 = vsub.f32 1.0, %v739
    %743 = vrot.lane.b32.xlu0 %v661, 32
    %v744 = vpop.permute.xlu0 %743
    %v746 = vmul.f32 %v741, %v744
    %v747 = vadd.f32 %v740, %v746
    %v748 = vtanh.pop %v747
    %750 = vrot.lane.b32.xlu0 %v748, 32
    %v751 = vpop.permute.xlu0 %750
    %v753 = vmul.f32 %v739, %v751
    %v754 = vmul.f32 %v741, %v617
    %v755 = vadd.f32 %v753, %v754
    %757 = vrot.lane.b32.xlu0 %v755, 54
    %v758 = vpop.permute.xlu0 %757
    %760 = vst.msk [vmem:[#allocation4] sm:$0x1] %vm310, %v758
    %762 = vrot.lane.b32.xlu0 %v747, 86
    %v763 = vpop.permute.xlu0 %762
    %765 = vst.msk [vmem:[#allocation6] sm:$0x1] %vm310, %v763
    %v766 = vld [vmem:[#allocation3] sm:$0xf]
    %v767 = vpack.c.bf16 %v766, %v766
    %v768 = vld [vmem:[%s6] sm:$0xf]
    %v769 = vld [vmem:[%s6 + $0x4] sm:$0xf]
    %v770 = vld [vmem:[%s6 + $0x8] sm:$0xf]
    %v771 = vld [vmem:[%s6 + $0xc] sm:$0xf]
    %v772 = vld [vmem:[%s7 + $0x2] sm:$0x1]
    %v773 = vlaneseq
    %v774 = vshrl.u32 %v773, 7
    %v775 = vsub.s32 0, %v774
    %v776 = vrot.slane %v772, %v775
    %v781 = vunpack.c.l.b16 %v768
    %v782 = vunpack.c.l.b16 %v769
    %v783 = vunpack.c.l.b16 %v770
    %v784 = vunpack.c.l.b16 %v771
    %v785 = vpack.c.b16 %v782, %v781
    %v786 = vpack.c.b16 %v784, %v783
    %v790 = vsel %vm59, %v767, 0
    %792 = vmatprep.subr.bf16.mxu0 0
    %793 = vmatpush1.bf16.msra.mxu0 %v785
    %794 = vmatprep.subr.bf16.mxu0 0
    %795 = vmatpush1.bf16.msra.mxu0 %v786
    %796 = vmatprep.subr.bf16.mxu0 0
    %797 = vmatpush1.bf16.msra.mxu0 0
    %798 = vmatprep.subr.bf16.mxu0 0
    %799 = vmatpush1.bf16.msra.mxu0 0
    %800 = vmatprep.subr.bf16.mxu0 0
    %801 = vmatpush1.bf16.msra.mxu0 0
    %802 = vmatprep.subr.bf16.mxu0 0
    %803 = vmatpush1.bf16.msra.mxu0 0
    %804 = vmatprep.subr.bf16.mxu0 0
    %805 = vmatpush1.bf16.msra.mxu0 0
    %806 = vmatprep.subr.bf16.mxu0 0
    %807 = vmatpush1.bf16.msra.mxu0 0
    %808 = vmatprep.subr.bf16.mxu0 0
    %809 = vmatpush1.bf16.msra.mxu0 0
    %810 = vmatprep.subr.bf16.mxu0 0
    %811 = vmatpush1.bf16.msra.mxu0 0
    %812 = vmatprep.subr.bf16.mxu0 0
    %813 = vmatpush1.bf16.msra.mxu0 0
    %814 = vmatprep.subr.bf16.mxu0 0
    %815 = vmatpush1.bf16.msra.mxu0 0
    %816 = vmatprep.subr.bf16.mxu0 0
    %817 = vmatpush1.bf16.msra.mxu0 0
    %818 = vmatprep.subr.bf16.mxu0 0
    %819 = vmatpush1.bf16.msra.mxu0 0
    %820 = vmatprep.subr.bf16.mxu0 0
    %821 = vmatpush1.bf16.msra.mxu0 0
    %822 = vmatprep.subr.bf16.mxu0 0
    %823 = vmatpush1.bf16.msra.mxu0 0
    %824 = vmatprep.mubr.bf16.mxu0 0
    %825 = vmatmul.mubr.bf16.gmra.mrb[0].mxu0 %v790
    %v826 = vpop.f32.mrb[0].mxu0
    %v827 = vadd.f32 %v776, %v826
    %v828 = vpop.f32.mrb[0].mxu0
    %v829 = vpop.f32.mrb[0].mxu0
    %v830 = vpop.f32.mrb[0].mxu0
    %831 = vdwg.mxu0
    %vm832 = vcmask 158720
    %v833 = vsel %vm832, %v827, -inf
    %834 = vmax.xlane.f32.xlu0 %v833
    %v835 = vpop.xlane.xlu0 %834
    %v836 = vsub.f32 %v827, %v835
    %v837 = vmul.f32 %v836, 1.442695
    %v838 = vpow.pop %v837
    %v839 = vsel %vm832, %v838, 0.0
    %840 = vadd.xlane.f32.xlu0 %v839
    %v841 = vpop.xlane.xlu0 %840
    %v842 = vlog2.pop %v841
    %v843 = vmul.f32 %v842, 0.6931472
    %v844 = vadd.f32 %v835, %v843
    %v845 = vsub.f32 %v827, %v844
    %846 = vst.msk [vmem:[#allocation9] sm:$0xf] %vm832, %v845
    // Predicated region
    $region34: #{attn_decoder_decode.1} parent=1 // pred_check
      _
    $region35: #{attn_decoder_decode.1} parent=1 // pred_check_branch
      %848 = sbr.rel (0) target = $region37
    $region36: #{attn_decoder_decode.1} parent=1 // pred_region
      %s850 = ssub.s32 16, 16
      %851 = vsyncadd [#allocation5], %s850
      %s853 = sshll.u32 [#allocation4], 4
      %s854 = int_to_ptr.vmem [resolvable:$true] %s853
      %856 = dma.vmem_to_hbm [thread:$0]  %s854, 16, %s8, [#allocation5]
    $region37: #{attn_decoder_decode.1} parent=1 // pred_fallthru
      _
    // Predicated region
    $region38: #{attn_decoder_decode.1} parent=1 // pred_check
      _
    $region39: #{attn_decoder_decode.1} parent=1 // pred_check_branch
      %858 = sbr.rel (0) target = $region41
    $region40: #{attn_decoder_decode.1} parent=1 // pred_region
      %s860 = ssub.s32 16, 16
      %861 = vsyncadd [#allocation7], %s860
      %s863 = sshll.u32 [#allocation6], 4
      %s864 = int_to_ptr.vmem [resolvable:$true] %s863
      %866 = dma.vmem_to_hbm [thread:$0]  %s864, 16, %s9, [#allocation7]
    $region41: #{attn_decoder_decode.1} parent=1 // pred_fallthru
      _
    // Predicated region
    $region42: #{attn_decoder_decode.1} parent=1 // pred_check
      _
    $region43: #{attn_decoder_decode.1} parent=1 // pred_check_branch
      %868 = sbr.rel (0) target = $region45
    $region44: #{attn_decoder_decode.1} parent=1 // pred_region
      %s870 = ssub.s32 64, 64
      %871 = vsyncadd [#allocation7], %s870
      %s873 = sshll.u32 [#allocation8], 4
      %s874 = int_to_ptr.vmem [resolvable:$true] %s873
      %876 = dma.vmem_to_hbm [thread:$0]  %s874, 64, %s10, [#allocation7]
    $region45: #{attn_decoder_decode.1} parent=1 // pred_fallthru
      _
    // Predicated region
    $region46: #{attn_decoder_decode.1} parent=1 // pred_check
      _
    $region47: #{attn_decoder_decode.1} parent=1 // pred_check_branch
      %878 = sbr.rel (0) target = $region49
    $region48: #{attn_decoder_decode.1} parent=1 // pred_region
      %s880 = ssub.s32 64, 64
      %881 = vsyncadd [#allocation10], %s880
      %s883 = sshll.u32 [#allocation9], 4
      %s884 = int_to_ptr.vmem [resolvable:$true] %s883
      %886 = dma.vmem_to_hbm [thread:$0]  %s884, 64, %s11, [#allocation10]
    $region49: #{attn_decoder_decode.1} parent=1 // pred_fallthru
      _
    // Predicated region
    $region50: #{attn_decoder_decode.1} parent=1 // pred_check
      _
    $region51: #{attn_decoder_decode.1} parent=1 // pred_check_branch
      %888 = sbr.rel (0) target = $region53
    $region52: #{attn_decoder_decode.1} parent=1 // pred_region
      %889 = dma.done [#allocation5], 16
    $region53: #{attn_decoder_decode.1} parent=1 // pred_fallthru
      _
    // Predicated region
    $region54: #{attn_decoder_decode.1} parent=1 // pred_check
      _
    $region55: #{attn_decoder_decode.1} parent=1 // pred_check_branch
      %891 = sbr.rel (0) target = $region57
    $region56: #{attn_decoder_decode.1} parent=1 // pred_region
      %892 = dma.done [#allocation7], 16
    $region57: #{attn_decoder_decode.1} parent=1 // pred_fallthru
      _
    // Predicated region
    $region58: #{attn_decoder_decode.1} parent=1 // pred_check
      _
    $region59: #{attn_decoder_decode.1} parent=1 // pred_check_branch
      %894 = sbr.rel (0) target = $region61
    $region60: #{attn_decoder_decode.1} parent=1 // pred_region
      %895 = dma.done [#allocation7], 64
    $region61: #{attn_decoder_decode.1} parent=1 // pred_fallthru
      _
    // Predicated region
    $region62: #{attn_decoder_decode.1} parent=1 // pred_check
      _
    $region63: #{attn_decoder_decode.1} parent=1 // pred_check_branch
      %897 = sbr.rel (0) target = $region65
    $region64: #{attn_decoder_decode.1} parent=1 // pred_region
      %898 = dma.done [#allocation10], 64
    $region65: #{attn_decoder_decode.1} parent=1 // pred_fallthru
      _
    %899 = vsyncpa [#allocation5], 1
    %900 = vsyncpa [#allocation7], 1
    %901 = vsyncpa [#allocation10], 1

</llo_original>
